<compile_context>
chip_gen: v5e
topology: v5e:2x2
jax: 0.10.0
libtpu: 0.0.40
codegen_flags: <defaults>
</compile_context>

<pallas_src>
import functools

import jax
import jax.numpy as jnp
from jax.experimental import pallas as pl
from jax.experimental.pallas import tpu as pltpu

KS = 7        # spatial-attention kernel size
PAD = 3       # padding for kernel_size=7
C_CHUNK = 8   # channel chunk == sublane count -> dense (8, HW) partials


def _chunk_start(ci):
    c0 = ci * C_CHUNK
    return c0 if isinstance(c0, int) else pl.multiple_of(c0, C_CHUNK)


def _chunk_loop(n, body, init=0):
    """carry = body(ci, carry) for ci in [0, n); static unroll when short."""
    if n == 0:
        return init
    if n <= 4:
        carry = init
        for ci in range(n):
            carry = body(ci, carry)
        return carry
    return jax.lax.fori_loop(0, n, body, init, unroll=2)


def cbam_kernel(x_ref, wfc_ref, bfc_ref, wmask_ref, o_ref, pool_ref, ca_ref,
                *, H, W, HW):
    # x_ref    : (1, C, HW_pad)   VMEM   lane-dense feature map (one batch element)
    # wfc_ref  : (M_pad, K_pad)   VMEM   zero-padded 1x1-conv weight (rows=out, cols=in)
    # bfc_ref  : (M_pad, 1)       VMEM   zero-padded bias
    # wmask_ref: (49, 2, HW_pad)  VMEM   tap-weight * boundary-mask per 7x7 tap
    # o_ref    : (1, C, HW_pad)   VMEM
    # pool_ref : (K_pad, 1) f32   VMEM scratch  per-channel spatial sums
    # ca_ref   : (M_pad, 1) f32   VMEM scratch  channel-attention scale (post-sigmoid)
    C = x_ref.shape[1]
    HW_pad = x_ref.shape[2]
    K_pad = pool_ref.shape[0]
    n_full = C // C_CHUNK
    rem = C - n_full * C_CHUNK
    c_tail = n_full * C_CHUNK
    inv_hw = 1.0 / float(HW)
    inv_c = 1.0 / float(C)

    # ---------- Phase 0: global average pool over the lane (H*W) axis ----------
    # Fused so x is only read from HBM once per batch element.
    pool_ref[...] = jnp.zeros((K_pad, 1), jnp.float32)    # padded rows must stay 0

    def pool_chunk(ci, carry):
        c0 = _chunk_start(ci)
        xc = x_ref[0, pl.ds(c0, C_CHUNK), :].astype(jnp.float32)
        pool_ref[pl.ds(c0, C_CHUNK), :] = jnp.sum(xc, axis=1, keepdims=True)
        return carry

    _chunk_loop(n_full, pool_chunk)
    if rem > 0:
        xr = x_ref[0, pl.ds(c_tail, rem), :].astype(jnp.float32)
        pool_ref[pl.ds(c_tail, rem), :] = jnp.sum(xr, axis=1, keepdims=True)

    # ---------- Channel attention: sigmoid(W @ pooled + b), tile-aligned MXU matvec ----------
    pooled = pool_ref[...] * inv_hw                        # (K_pad, 1); rows >= C are zero
    rhs = jnp.broadcast_to(pooled, (K_pad, 128))           # lane splat -> aligned RHS
    logits = jnp.dot(wfc_ref[...], rhs,
                     preferred_element_type=jnp.float32)[:, 0:1] + bfc_ref[...]
    ca_ref[...] = jax.nn.sigmoid(logits)                   # (M_pad, 1); rows >= C unused

    # ---------- Phase 1: channel mean / max of y = x*ca with (8, HW) dense partials ----------
    def stat_chunk(ci, carry):
        s8, m8 = carry
        c0 = _chunk_start(ci)
        xc = x_ref[0, pl.ds(c0, C_CHUNK), :].astype(jnp.float32)
        yc = xc * ca_ref[pl.ds(c0, C_CHUNK), :]
        return s8 + yc, jnp.maximum(m8, yc)

    if n_full > 0:
        s8, m8 = _chunk_loop(
            n_full, stat_chunk,
            (jnp.zeros((C_CHUNK, HW_pad), jnp.float32),
             jnp.full((C_CHUNK, HW_pad), -jnp.inf, jnp.float32)))
        mu = jnp.sum(s8, axis=0, keepdims=True)            # one sublane collapse (not per chunk)
        mx = jnp.max(m8, axis=0, keepdims=True)
    else:
        mu = jnp.zeros((1, HW_pad), jnp.float32)
        mx = jnp.full((1, HW_pad), -jnp.inf, jnp.float32)
    if rem > 0:
        xr = x_ref[0, pl.ds(c_tail, rem), :].astype(jnp.float32)
        yr = xr * ca_ref[pl.ds(c_tail, rem), :]
        mu = mu + jnp.sum(yr, axis=0, keepdims=True)
        mx = jnp.maximum(mx, jnp.max(yr, axis=0, keepdims=True))
    stats = jnp.concatenate([mu * inv_c, mx], axis=0)      # (2, HW_pad)  [mean; max]

    # ---------- 7x7 spatial conv: one lane roll + mul + add per tap ----------
    acc0 = jnp.zeros((2, HW_pad), jnp.float32)
    acc1 = jnp.zeros((2, HW_pad), jnp.float32)
    for t in range(KS * KS):
        ki, kj = t // KS, t % KS
        shift = (-((ki - PAD) * W + (kj - PAD))) % HW_pad
        rolled = stats if shift == 0 else pltpu.roll(stats, shift=shift, axis=1)
        wm = wmask_ref[t]                                  # (2, HW_pad) tap-weighted mask
        if t % 2 == 0:
            acc0 = acc0 + wm * rolled
        else:
            acc1 = acc1 + wm * rolled
    conv = jnp.sum(acc0 + acc1, axis=0, keepdims=True)     # sum over the 2 stat rows
    sa = jax.nn.sigmoid(conv)                              # (1, HW_pad)
    sa8 = jnp.broadcast_to(sa, (C_CHUNK, HW_pad))          # hoisted broadcast

    # ---------- Phase 2: o = x * ca * sa, lane-dense stores ----------
    def store_chunk(ci, carry):
        c0 = _chunk_start(ci)
        xc = x_ref[0, pl.ds(c0, C_CHUNK), :].astype(jnp.float32)
        yc = xc * ca_ref[pl.ds(c0, C_CHUNK), :]
        o_ref[0, pl.ds(c0, C_CHUNK), :] = (yc * sa8).astype(o_ref.dtype)
        return carry

    _chunk_loop(n_full, store_chunk)
    if rem > 0:
        xr = x_ref[0, pl.ds(c_tail, rem), :].astype(jnp.float32)
        yr = xr * ca_ref[pl.ds(c_tail, rem), :]
        o_ref[0, pl.ds(c_tail, rem), :] = (yr * sa).astype(o_ref.dtype)


def cbam_forward(x, w_fc, b_fc, w_sp):
    """x: (B, C, H, W); w_fc: (C, C) 1x1-conv weight; b_fc: (C,); w_sp: (2, 7, 7)."""
    B, C, H, W = x.shape
    HW = H * W
    HW_pad = pl.cdiv(HW, 128) * 128

    x_flat = x.reshape(B, C, HW)
    if HW_pad != HW:
        # TODO(synk): for non-128-aligned H*W this pad is one extra XLA copy of x;
        # an in-kernel masked tail would avoid it at the cost of masked vld/vst.
        x_flat = jnp.pad(x_flat, ((0, 0), (0, 0), (0, HW_pad - HW)))

    # Tile-aligned, zero-padded channel-attention weights for the in-kernel MXU matvec.
    M_pad = max(8, pl.cdiv(C, 8) * 8)
    K_pad = max(128, pl.cdiv(C, 128) * 128)
    wfc_pad = jnp.zeros((M_pad, K_pad), jnp.float32).at[:C, :C].set(
        w_fc.astype(jnp.float32))
    bfc_pad = jnp.zeros((M_pad, 1), jnp.float32).at[:C, 0].set(
        b_fc.astype(jnp.float32))

    # Tap-weighted boundary masks for the 7x7 conv in the flattened (H*W) domain;
    # built once, resident in VMEM across the batch grid (constant index_map).
    lane = jnp.arange(HW_pad)
    h_idx = lane // W
    w_idx = lane % W
    in_img = lane < HW
    masks = []
    for ki in range(KS):
        dy = ki - PAD
        row_ok = (h_idx + dy >= 0) & (h_idx + dy < H)
        for kj in range(KS):
            dx = kj - PAD
            col_ok = (w_idx + dx >= 0) & (w_idx + dx < W)
            masks.append(row_ok & col_ok & in_img)
    mask_arr = jnp.stack(masks).astype(jnp.float32)              # (49, HW_pad)
    w_taps = w_sp.reshape(2, KS * KS).T.astype(jnp.float32)      # (49, 2): [tap, stat-row]
    wmask = w_taps[:, :, None] * mask_arr[:, None, :]            # (49, 2, HW_pad)

    # Explicit VMEM budget: double-buffered in/out batch blocks + resident
    # weights/masks + in-kernel temporaries, capped below physical capacity.
    blk = C * HW_pad * x_flat.dtype.itemsize
    est = 4 * blk + wmask.size * 4
    est += (M_pad * K_pad + 2 * M_pad + 2 * K_pad) * 4
    est += (3 * C_CHUNK + 8) * HW_pad * 4
    try:
        vmem_cap = int(pltpu.get_tpu_info().vmem_capacity_bytes)
    except Exception:
        vmem_cap = 64 * 1024 * 1024
    vmem_limit = int(min(max(2 * est, 32 * 1024 * 1024), int(vmem_cap * 0.9)))

    out_flat = pl.pallas_call(
        functools.partial(cbam_kernel, H=H, W=W, HW=HW),
        out_shape=jax.ShapeDtypeStruct((B, C, HW_pad), x.dtype),
        grid=(B,),
        in_specs=[
            pl.BlockSpec((1, C, HW_pad), lambda b: (b, 0, 0)),
            pl.BlockSpec((M_pad, K_pad), lambda b: (0, 0)),
            pl.BlockSpec((M_pad, 1), lambda b: (0, 0)),
            pl.BlockSpec((KS * KS, 2, HW_pad), lambda b: (0, 0, 0)),
        ],
        out_specs=pl.BlockSpec((1, C, HW_pad), lambda b: (b, 0, 0)),
        scratch_shapes=[
            pltpu.VMEM((K_pad, 1), jnp.float32),   # pooled per-channel sums
            pltpu.VMEM((M_pad, 1), jnp.float32),   # channel-attention scale
        ],
        # batch steps are independent -> shard across TensorCores on v7x
        compiler_params=pltpu.CompilerParams(
            dimension_semantics=("parallel",),
            vmem_limit_bytes=vmem_limit),
    )(x_flat, wfc_pad, bfc_pad, wmask)

    if HW_pad != HW:
        out_flat = out_flat[:, :, :HW]
    return out_flat.reshape(B, C, H, W)


def cbam_ref(x, w_fc, b_fc, w_sp):
    """Pure-JAX reference matching the PyTorch module semantics."""
    pooled = jnp.mean(x, axis=(2, 3))                        # (B, C)
    logits = pooled @ w_fc.T + b_fc                          # (B, C)  (fc bias=True)
    ca = jax.nn.sigmoid(logits)[:, :, None, None]
    y = x * ca
    mu = jnp.mean(y, axis=1, keepdims=True)
    mx = jnp.max(y, axis=1, keepdims=True)
    stats = jnp.concatenate([mu, mx], axis=1)                # (B, 2, H, W)
    conv = jax.lax.conv_general_dilated(
        stats, w_sp[None],                                    # (1, 2, 7, 7), bias=False
        window_strides=(1, 1), padding=((PAD, PAD), (PAD, PAD)),
        dimension_numbers=("NCHW", "OIHW", "NCHW"))
    sa = jax.nn.sigmoid(conv)                                # (B, 1, H, W)
    return y * sa


if __name__ == "__main__":
    B, C, H, W = 2, 4, 16, 16
    key = jax.random.PRNGKey(0)
    k1, k2, k3, k4 = jax.random.split(key, 4)

    x = jax.random.normal(k1, (B, C, H, W), jnp.float32)
    # deterministic synthetic parameters (shapes from nn.Conv2d in __init__)
    w_fc = 0.3 * jax.random.normal(k2, (C, C), jnp.float32)       # Conv2d(C,C,1) weight[:,:,0,0]
    b_fc = 0.1 * jax.random.normal(k3, (C,), jnp.float32)         # Conv2d(C,C,1) bias
    w_sp = 0.2 * jax.random.normal(k4, (2, KS, KS), jnp.float32)  # Conv2d(2,1,7) weight[0]

    out = cbam_forward(x, w_fc, b_fc, w_sp)
    out = jax.block_until_ready(out)

    ref = cbam_ref(x, w_fc, b_fc, w_sp)
    err = float(jnp.max(jnp.abs(out - ref)))
    assert jnp.allclose(out, ref, rtol=1e-3, atol=1e-3), f"max abs err = {err}"
    print("KERNEL_OK")
</pallas_src>

<mosaic_0001>
module attributes {stable_mosaic.version = 11 : i64} {
  func.func @cbam_kernel(%arg0: i32, %arg1: memref<1x4x256xf32, #tpu.memory_space<vmem>>, %arg2: memref<8x128xf32, #tpu.memory_space<vmem>>, %arg3: memref<8x1xf32, #tpu.memory_space<vmem>>, %arg4: memref<49x2x256xf32, #tpu.memory_space<vmem>>, %arg5: memref<1x4x256xf32, #tpu.memory_space<vmem>>, %arg6: memref<128x1xf32, #tpu.memory_space<vmem>>, %arg7: memref<8x1xf32, #tpu.memory_space<vmem>>) attributes {dimension_semantics = [#tpu.dimension_semantics<parallel>], iteration_bounds = array<i64: 2>, scalar_prefetch = 0 : i64, scratch_operands = 2 : i64, tpu.core_type = #tpu.core_type<tc>, window_params = [{transform_indices = @transform_0, window_bounds = array<i64: 1, 4, 256>}, {pipeline_mode = #tpu.pipeline_mode<synchronous>, transform_indices = @transform_1, window_bounds = array<i64: 8, 128>}, {pipeline_mode = #tpu.pipeline_mode<synchronous>, transform_indices = @transform_2, window_bounds = array<i64: 8, 1>}, {pipeline_mode = #tpu.pipeline_mode<synchronous>, transform_indices = @transform_3, window_bounds = array<i64: 49, 2, 256>}, {transform_indices = @transform_4, window_bounds = array<i64: 1, 4, 256>}]} {
    %cst = arith.constant 0.000000e+00 : f32
    %0 = vector.broadcast %cst : f32 to vector<128x1xf32>
    %c0 = arith.constant 0 : index
    %c0_0 = arith.constant 0 : index
    %1 = vector.load %arg6[%c0, %c0_0] : memref<128x1xf32, #tpu.memory_space<vmem>>, vector<128x1xf32>
    tpu.vector_store %arg6[%c0, %c0_0], %0 {strides = array<i32>} : memref<128x1xf32, #tpu.memory_space<vmem>>, vector<128x1xf32>,
    %c0_1 = arith.constant 0 : index
    %c0_2 = arith.constant 0 : index
    %c0_3 = arith.constant 0 : index
    %2 = vector.load %arg1[%c0_1, %c0_2, %c0_3] : memref<1x4x256xf32, #tpu.memory_space<vmem>>, vector<1x4x256xf32>
    %3 = vector.shape_cast %2 : vector<1x4x256xf32> to vector<4x256xf32>
    %cst_4 = arith.constant dense<0.000000e+00> : vector<4xf32>
    %4 = vector.multi_reduction <add>, %3, %cst_4 [1] : vector<4x256xf32> to vector<4xf32>
    %5 = vector.shape_cast %4 : vector<4xf32> to vector<4x1xf32>
    %c0_5 = arith.constant 0 : index
    %c0_6 = arith.constant 0 : index
    %6 = vector.load %arg6[%c0_5, %c0_6] : memref<128x1xf32, #tpu.memory_space<vmem>>, vector<4x1xf32>
    tpu.vector_store %arg6[%c0_5, %c0_6], %5 {strides = array<i32>} : memref<128x1xf32, #tpu.memory_space<vmem>>, vector<4x1xf32>,
    %c0_7 = arith.constant 0 : index
    %c0_8 = arith.constant 0 : index
    %7 = vector.load %arg6[%c0_7, %c0_8] : memref<128x1xf32, #tpu.memory_space<vmem>>, vector<128x1xf32>
    %cst_9 = arith.constant 3.906250e-03 : f32
    %8 = vector.broadcast %cst_9 : f32 to vector<128x1xf32>
    %9 = arith.mulf %7, %8 : vector<128x1xf32>
    %10 = vector.shape_cast %9 : vector<128x1xf32> to vector<128x1xf32>
    %11 = vector.broadcast %10 : vector<128x1xf32> to vector<128x128xf32>
    %c0_10 = arith.constant 0 : index
    %c0_11 = arith.constant 0 : index
    %12 = vector.load %arg2[%c0_10, %c0_11] : memref<8x128xf32, #tpu.memory_space<vmem>>, vector<8x128xf32>
    %cst_12 = arith.constant dense<0.000000e+00> : vector<8x128xf32>
    %13 = tpu.matmul %12, %11, %cst_12 {dimension_numbers = #tpu.dot_dimension_numbers<[1], [0], [0], [1], [0, 0, 1, 1], [], []>} : vector<8x128xf32>, vector<128x128xf32>, vector<8x128xf32> -> vector<8x128xf32>
    %14 = vector.extract_strided_slice %13 {offsets = [0, 0], sizes = [8, 1], strides = [1, 1]} : vector<8x128xf32> to vector<8x1xf32>
    %c0_13 = arith.constant 0 : index
    %c0_14 = arith.constant 0 : index
    %15 = vector.load %arg3[%c0_13, %c0_14] : memref<8x1xf32, #tpu.memory_space<vmem>>, vector<8x1xf32>
    %16 = arith.addf %14, %15 : vector<8x1xf32>
    %17 = arith.negf %16 : vector<8x1xf32>
    %18 = math.exp %17 : vector<8x1xf32>
    %cst_15 = arith.constant 1.000000e+00 : f32
    %19 = vector.broadcast %cst_15 : f32 to vector<8x1xf32>
    %20 = arith.addf %19, %18 : vector<8x1xf32>
    %21 = arith.divf %19, %20 : vector<8x1xf32>
    %c0_16 = arith.constant 0 : index
    %c0_17 = arith.constant 0 : index
    %22 = vector.load %arg7[%c0_16, %c0_17] : memref<8x1xf32, #tpu.memory_space<vmem>>, vector<8x1xf32>
    tpu.vector_store %arg7[%c0_16, %c0_17], %21 {strides = array<i32>} : memref<8x1xf32, #tpu.memory_space<vmem>>, vector<8x1xf32>,
    %cst_18 = arith.constant 0.000000e+00 : f32
    %23 = vector.broadcast %cst_18 : f32 to vector<1x256xf32>
    %cst_19 = arith.constant 0xFF800000 : f32
    %24 = vector.broadcast %cst_19 : f32 to vector<1x256xf32>
    %c0_20 = arith.constant 0 : index
    %c0_21 = arith.constant 0 : index
    %c0_22 = arith.constant 0 : index
    %25 = vector.load %arg1[%c0_20, %c0_21, %c0_22] : memref<1x4x256xf32, #tpu.memory_space<vmem>>, vector<1x4x256xf32>
    %26 = vector.shape_cast %25 : vector<1x4x256xf32> to vector<4x256xf32>
    %c0_23 = arith.constant 0 : index
    %c0_24 = arith.constant 0 : index
    %27 = vector.load %arg7[%c0_23, %c0_24] : memref<8x1xf32, #tpu.memory_space<vmem>>, vector<4x1xf32>
    %28 = vector.broadcast %27 : vector<4x1xf32> to vector<4x256xf32>
    %29 = arith.mulf %26, %28 : vector<4x256xf32>
    %cst_25 = arith.constant dense<0.000000e+00> : vector<256xf32>
    %30 = vector.multi_reduction <add>, %29, %cst_25 [0] : vector<4x256xf32> to vector<256xf32>
    %31 = vector.shape_cast %30 : vector<256xf32> to vector<1x256xf32>
    %32 = arith.addf %23, %31 : vector<1x256xf32>
    %cst_26 = arith.constant dense<0xFF800000> : vector<256xf32>
    %33 = vector.multi_reduction <maximumf>, %29, %cst_26 [0] : vector<4x256xf32> to vector<256xf32>
    %34 = vector.shape_cast %33 : vector<256xf32> to vector<1x256xf32>
    %35 = arith.maximumf %24, %34 : vector<1x256xf32>
    %cst_27 = arith.constant 2.500000e-01 : f32
    %36 = vector.broadcast %cst_27 : f32 to vector<1x256xf32>
    %37 = arith.mulf %32, %36 : vector<1x256xf32>
    %38 = tpu.concatenate %37, %35 in 0 : vector<1x256xf32>, vector<1x256xf32> -> vector<2x256xf32>
    %cst_28 = arith.constant 0.000000e+00 : f32
    %39 = vector.broadcast %cst_28 : f32 to vector<2x256xf32>
    %cst_29 = arith.constant 0.000000e+00 : f32
    %40 = vector.broadcast %cst_29 : f32 to vector<2x256xf32>
    %c51_i32 = arith.constant 51 : i32
    %41 = tpu.dynamic_rotate %38 by %c51_i32 dim 1 : vector<2x256xf32>, i32 -> vector<2x256xf32>
    %c0_30 = arith.constant 0 : index
    %c0_31 = arith.constant 0 : index
    %c0_32 = arith.constant 0 : index
    %42 = vector.load %arg4[%c0_30, %c0_31, %c0_32] : memref<49x2x256xf32, #tpu.memory_space<vmem>>, vector<1x2x256xf32>
    %43 = vector.shape_cast %42 : vector<1x2x256xf32> to vector<2x256xf32>
    %44 = arith.mulf %43, %41 : vector<2x256xf32>
    %45 = arith.addf %39, %44 : vector<2x256xf32>
    %c50_i32 = arith.constant 50 : i32
    %46 = tpu.dynamic_rotate %38 by %c50_i32 dim 1 : vector<2x256xf32>, i32 -> vector<2x256xf32>
    %c1 = arith.constant 1 : index
    %c0_33 = arith.constant 0 : index
    %c0_34 = arith.constant 0 : index
    %47 = vector.load %arg4[%c1, %c0_33, %c0_34] : memref<49x2x256xf32, #tpu.memory_space<vmem>>, vector<1x2x256xf32>
    %48 = vector.shape_cast %47 : vector<1x2x256xf32> to vector<2x256xf32>
    %49 = arith.mulf %48, %46 : vector<2x256xf32>
    %50 = arith.addf %40, %49 : vector<2x256xf32>
    %c49_i32 = arith.constant 49 : i32
    %51 = tpu.dynamic_rotate %38 by %c49_i32 dim 1 : vector<2x256xf32>, i32 -> vector<2x256xf32>
    %c2 = arith.constant 2 : index
    %c0_35 = arith.constant 0 : index
    %c0_36 = arith.constant 0 : index
    %52 = vector.load %arg4[%c2, %c0_35, %c0_36] : memref<49x2x256xf32, #tpu.memory_space<vmem>>, vector<1x2x256xf32>
    %53 = vector.shape_cast %52 : vector<1x2x256xf32> to vector<2x256xf32>
    %54 = arith.mulf %53, %51 : vector<2x256xf32>
    %55 = arith.addf %45, %54 : vector<2x256xf32>
    %c48_i32 = arith.constant 48 : i32
    %56 = tpu.dynamic_rotate %38 by %c48_i32 dim 1 : vector<2x256xf32>, i32 -> vector<2x256xf32>
    %c3 = arith.constant 3 : index
    %c0_37 = arith.constant 0 : index
    %c0_38 = arith.constant 0 : index
    %57 = vector.load %arg4[%c3, %c0_37, %c0_38] : memref<49x2x256xf32, #tpu.memory_space<vmem>>, vector<1x2x256xf32>
    %58 = vector.shape_cast %57 : vector<1x2x256xf32> to vector<2x256xf32>
    %59 = arith.mulf %58, %56 : vector<2x256xf32>
    %60 = arith.addf %50, %59 : vector<2x256xf32>
    %c47_i32 = arith.constant 47 : i32
    %61 = tpu.dynamic_rotate %38 by %c47_i32 dim 1 : vector<2x256xf32>, i32 -> vector<2x256xf32>
    %c4 = arith.constant 4 : index
    %c0_39 = arith.constant 0 : index
    %c0_40 = arith.constant 0 : index
    %62 = vector.load %arg4[%c4, %c0_39, %c0_40] : memref<49x2x256xf32, #tpu.memory_space<vmem>>, vector<1x2x256xf32>
    %63 = vector.shape_cast %62 : vector<1x2x256xf32> to vector<2x256xf32>
    %64 = arith.mulf %63, %61 : vector<2x256xf32>
    %65 = arith.addf %55, %64 : vector<2x256xf32>
    %c46_i32 = arith.constant 46 : i32
    %66 = tpu.dynamic_rotate %38 by %c46_i32 dim 1 : vector<2x256xf32>, i32 -> vector<2x256xf32>
    %c5 = arith.constant 5 : index
    %c0_41 = arith.constant 0 : index
    %c0_42 = arith.constant 0 : index
    %67 = vector.load %arg4[%c5, %c0_41, %c0_42] : memref<49x2x256xf32, #tpu.memory_space<vmem>>, vector<1x2x256xf32>
    %68 = vector.shape_cast %67 : vector<1x2x256xf32> to vector<2x256xf32>
    %69 = arith.mulf %68, %66 : vector<2x256xf32>
    %70 = arith.addf %60, %69 : vector<2x256xf32>
    %c45_i32 = arith.constant 45 : i32
    %71 = tpu.dynamic_rotate %38 by %c45_i32 dim 1 : vector<2x256xf32>, i32 -> vector<2x256xf32>
    %c6 = arith.constant 6 : index
    %c0_43 = arith.constant 0 : index
    %c0_44 = arith.constant 0 : index
    %72 = vector.load %arg4[%c6, %c0_43, %c0_44] : memref<49x2x256xf32, #tpu.memory_space<vmem>>, vector<1x2x256xf32>
    %73 = vector.shape_cast %72 : vector<1x2x256xf32> to vector<2x256xf32>
    %74 = arith.mulf %73, %71 : vector<2x256xf32>
    %75 = arith.addf %65, %74 : vector<2x256xf32>
    %c35_i32 = arith.constant 35 : i32
    %76 = tpu.dynamic_rotate %38 by %c35_i32 dim 1 : vector<2x256xf32>, i32 -> vector<2x256xf32>
    %c7 = arith.constant 7 : index
    %c0_45 = arith.constant 0 : index
    %c0_46 = arith.constant 0 : index
    %77 = vector.load %arg4[%c7, %c0_45, %c0_46] : memref<49x2x256xf32, #tpu.memory_space<vmem>>, vector<1x2x256xf32>
    %78 = vector.shape_cast %77 : vector<1x2x256xf32> to vector<2x256xf32>
    %79 = arith.mulf %78, %76 : vector<2x256xf32>
    %80 = arith.addf %70, %79 : vector<2x256xf32>
    %c34_i32 = arith.constant 34 : i32
    %81 = tpu.dynamic_rotate %38 by %c34_i32 dim 1 : vector<2x256xf32>, i32 -> vector<2x256xf32>
    %c8 = arith.constant 8 : index
    %c0_47 = arith.constant 0 : index
    %c0_48 = arith.constant 0 : index
    %82 = vector.load %arg4[%c8, %c0_47, %c0_48] : memref<49x2x256xf32, #tpu.memory_space<vmem>>, vector<1x2x256xf32>
    %83 = vector.shape_cast %82 : vector<1x2x256xf32> to vector<2x256xf32>
    %84 = arith.mulf %83, %81 : vector<2x256xf32>
    %85 = arith.addf %75, %84 : vector<2x256xf32>
    %c33_i32 = arith.constant 33 : i32
    %86 = tpu.dynamic_rotate %38 by %c33_i32 dim 1 : vector<2x256xf32>, i32 -> vector<2x256xf32>
    %c9 = arith.constant 9 : index
    %c0_49 = arith.constant 0 : index
    %c0_50 = arith.constant 0 : index
    %87 = vector.load %arg4[%c9, %c0_49, %c0_50] : memref<49x2x256xf32, #tpu.memory_space<vmem>>, vector<1x2x256xf32>
    %88 = vector.shape_cast %87 : vector<1x2x256xf32> to vector<2x256xf32>
    %89 = arith.mulf %88, %86 : vector<2x256xf32>
    %90 = arith.addf %80, %89 : vector<2x256xf32>
    %c32_i32 = arith.constant 32 : i32
    %91 = tpu.dynamic_rotate %38 by %c32_i32 dim 1 : vector<2x256xf32>, i32 -> vector<2x256xf32>
    %c10 = arith.constant 10 : index
    %c0_51 = arith.constant 0 : index
    %c0_52 = arith.constant 0 : index
    %92 = vector.load %arg4[%c10, %c0_51, %c0_52] : memref<49x2x256xf32, #tpu.memory_space<vmem>>, vector<1x2x256xf32>
    %93 = vector.shape_cast %92 : vector<1x2x256xf32> to vector<2x256xf32>
    %94 = arith.mulf %93, %91 : vector<2x256xf32>
    %95 = arith.addf %85, %94 : vector<2x256xf32>
    %c31_i32 = arith.constant 31 : i32
    %96 = tpu.dynamic_rotate %38 by %c31_i32 dim 1 : vector<2x256xf32>, i32 -> vector<2x256xf32>
    %c11 = arith.constant 11 : index
    %c0_53 = arith.constant 0 : index
    %c0_54 = arith.constant 0 : index
    %97 = vector.load %arg4[%c11, %c0_53, %c0_54] : memref<49x2x256xf32, #tpu.memory_space<vmem>>, vector<1x2x256xf32>
    %98 = vector.shape_cast %97 : vector<1x2x256xf32> to vector<2x256xf32>
    %99 = arith.mulf %98, %96 : vector<2x256xf32>
    %100 = arith.addf %90, %99 : vector<2x256xf32>
    %c30_i32 = arith.constant 30 : i32
    %101 = tpu.dynamic_rotate %38 by %c30_i32 dim 1 : vector<2x256xf32>, i32 -> vector<2x256xf32>
    %c12 = arith.constant 12 : index
    %c0_55 = arith.constant 0 : index
    %c0_56 = arith.constant 0 : index
    %102 = vector.load %arg4[%c12, %c0_55, %c0_56] : memref<49x2x256xf32, #tpu.memory_space<vmem>>, vector<1x2x256xf32>
    %103 = vector.shape_cast %102 : vector<1x2x256xf32> to vector<2x256xf32>
    %104 = arith.mulf %103, %101 : vector<2x256xf32>
    %105 = arith.addf %95, %104 : vector<2x256xf32>
    %c29_i32 = arith.constant 29 : i32
    %106 = tpu.dynamic_rotate %38 by %c29_i32 dim 1 : vector<2x256xf32>, i32 -> vector<2x256xf32>
    %c13 = arith.constant 13 : index
    %c0_57 = arith.constant 0 : index
    %c0_58 = arith.constant 0 : index
    %107 = vector.load %arg4[%c13, %c0_57, %c0_58] : memref<49x2x256xf32, #tpu.memory_space<vmem>>, vector<1x2x256xf32>
    %108 = vector.shape_cast %107 : vector<1x2x256xf32> to vector<2x256xf32>
    %109 = arith.mulf %108, %106 : vector<2x256xf32>
    %110 = arith.addf %100, %109 : vector<2x256xf32>
    %c19_i32 = arith.constant 19 : i32
    %111 = tpu.dynamic_rotate %38 by %c19_i32 dim 1 : vector<2x256xf32>, i32 -> vector<2x256xf32>
    %c14 = arith.constant 14 : index
    %c0_59 = arith.constant 0 : index
    %c0_60 = arith.constant 0 : index
    %112 = vector.load %arg4[%c14, %c0_59, %c0_60] : memref<49x2x256xf32, #tpu.memory_space<vmem>>, vector<1x2x256xf32>
    %113 = vector.shape_cast %112 : vector<1x2x256xf32> to vector<2x256xf32>
    %114 = arith.mulf %113, %111 : vector<2x256xf32>
    %115 = arith.addf %105, %114 : vector<2x256xf32>
    %c18_i32 = arith.constant 18 : i32
    %116 = tpu.dynamic_rotate %38 by %c18_i32 dim 1 : vector<2x256xf32>, i32 -> vector<2x256xf32>
    %c15 = arith.constant 15 : index
    %c0_61 = arith.constant 0 : index
    %c0_62 = arith.constant 0 : index
    %117 = vector.load %arg4[%c15, %c0_61, %c0_62] : memref<49x2x256xf32, #tpu.memory_space<vmem>>, vector<1x2x256xf32>
    %118 = vector.shape_cast %117 : vector<1x2x256xf32> to vector<2x256xf32>
    %119 = arith.mulf %118, %116 : vector<2x256xf32>
    %120 = arith.addf %110, %119 : vector<2x256xf32>
    %c17_i32 = arith.constant 17 : i32
    %121 = tpu.dynamic_rotate %38 by %c17_i32 dim 1 : vector<2x256xf32>, i32 -> vector<2x256xf32>
    %c16 = arith.constant 16 : index
    %c0_63 = arith.constant 0 : index
    %c0_64 = arith.constant 0 : index
    %122 = vector.load %arg4[%c16, %c0_63, %c0_64] : memref<49x2x256xf32, #tpu.memory_space<vmem>>, vector<1x2x256xf32>
    %123 = vector.shape_cast %122 : vector<1x2x256xf32> to vector<2x256xf32>
    %124 = arith.mulf %123, %121 : vector<2x256xf32>
    %125 = arith.addf %115, %124 : vector<2x256xf32>
    %c16_i32 = arith.constant 16 : i32
    %126 = tpu.dynamic_rotate %38 by %c16_i32 dim 1 : vector<2x256xf32>, i32 -> vector<2x256xf32>
    %c17 = arith.constant 17 : index
    %c0_65 = arith.constant 0 : index
    %c0_66 = arith.constant 0 : index
    %127 = vector.load %arg4[%c17, %c0_65, %c0_66] : memref<49x2x256xf32, #tpu.memory_space<vmem>>, vector<1x2x256xf32>
    %128 = vector.shape_cast %127 : vector<1x2x256xf32> to vector<2x256xf32>
    %129 = arith.mulf %128, %126 : vector<2x256xf32>
    %130 = arith.addf %120, %129 : vector<2x256xf32>
    %c15_i32 = arith.constant 15 : i32
    %131 = tpu.dynamic_rotate %38 by %c15_i32 dim 1 : vector<2x256xf32>, i32 -> vector<2x256xf32>
    %c18 = arith.constant 18 : index
    %c0_67 = arith.constant 0 : index
    %c0_68 = arith.constant 0 : index
    %132 = vector.load %arg4[%c18, %c0_67, %c0_68] : memref<49x2x256xf32, #tpu.memory_space<vmem>>, vector<1x2x256xf32>
    %133 = vector.shape_cast %132 : vector<1x2x256xf32> to vector<2x256xf32>
    %134 = arith.mulf %133, %131 : vector<2x256xf32>
    %135 = arith.addf %125, %134 : vector<2x256xf32>
    %c14_i32 = arith.constant 14 : i32
    %136 = tpu.dynamic_rotate %38 by %c14_i32 dim 1 : vector<2x256xf32>, i32 -> vector<2x256xf32>
    %c19 = arith.constant 19 : index
    %c0_69 = arith.constant 0 : index
    %c0_70 = arith.constant 0 : index
    %137 = vector.load %arg4[%c19, %c0_69, %c0_70] : memref<49x2x256xf32, #tpu.memory_space<vmem>>, vector<1x2x256xf32>
    %138 = vector.shape_cast %137 : vector<1x2x256xf32> to vector<2x256xf32>
    %139 = arith.mulf %138, %136 : vector<2x256xf32>
    %140 = arith.addf %130, %139 : vector<2x256xf32>
    %c13_i32 = arith.constant 13 : i32
    %141 = tpu.dynamic_rotate %38 by %c13_i32 dim 1 : vector<2x256xf32>, i32 -> vector<2x256xf32>
    %c20 = arith.constant 20 : index
    %c0_71 = arith.constant 0 : index
    %c0_72 = arith.constant 0 : index
    %142 = vector.load %arg4[%c20, %c0_71, %c0_72] : memref<49x2x256xf32, #tpu.memory_space<vmem>>, vector<1x2x256xf32>
    %143 = vector.shape_cast %142 : vector<1x2x256xf32> to vector<2x256xf32>
    %144 = arith.mulf %143, %141 : vector<2x256xf32>
    %145 = arith.addf %135, %144 : vector<2x256xf32>
    %c3_i32 = arith.constant 3 : i32
    %146 = tpu.dynamic_rotate %38 by %c3_i32 dim 1 : vector<2x256xf32>, i32 -> vector<2x256xf32>
    %c21 = arith.constant 21 : index
    %c0_73 = arith.constant 0 : index
    %c0_74 = arith.constant 0 : index
    %147 = vector.load %arg4[%c21, %c0_73, %c0_74] : memref<49x2x256xf32, #tpu.memory_space<vmem>>, vector<1x2x256xf32>
    %148 = vector.shape_cast %147 : vector<1x2x256xf32> to vector<2x256xf32>
    %149 = arith.mulf %148, %146 : vector<2x256xf32>
    %150 = arith.addf %140, %149 : vector<2x256xf32>
    %c2_i32 = arith.constant 2 : i32
    %151 = tpu.dynamic_rotate %38 by %c2_i32 dim 1 : vector<2x256xf32>, i32 -> vector<2x256xf32>
    %c22 = arith.constant 22 : index
    %c0_75 = arith.constant 0 : index
    %c0_76 = arith.constant 0 : index
    %152 = vector.load %arg4[%c22, %c0_75, %c0_76] : memref<49x2x256xf32, #tpu.memory_space<vmem>>, vector<1x2x256xf32>
    %153 = vector.shape_cast %152 : vector<1x2x256xf32> to vector<2x256xf32>
    %154 = arith.mulf %153, %151 : vector<2x256xf32>
    %155 = arith.addf %145, %154 : vector<2x256xf32>
    %c1_i32 = arith.constant 1 : i32
    %156 = tpu.dynamic_rotate %38 by %c1_i32 dim 1 : vector<2x256xf32>, i32 -> vector<2x256xf32>
    %c23 = arith.constant 23 : index
    %c0_77 = arith.constant 0 : index
    %c0_78 = arith.constant 0 : index
    %157 = vector.load %arg4[%c23, %c0_77, %c0_78] : memref<49x2x256xf32, #tpu.memory_space<vmem>>, vector<1x2x256xf32>
    %158 = vector.shape_cast %157 : vector<1x2x256xf32> to vector<2x256xf32>
    %159 = arith.mulf %158, %156 : vector<2x256xf32>
    %160 = arith.addf %150, %159 : vector<2x256xf32>
    %c24 = arith.constant 24 : index
    %c0_79 = arith.constant 0 : index
    %c0_80 = arith.constant 0 : index
    %161 = vector.load %arg4[%c24, %c0_79, %c0_80] : memref<49x2x256xf32, #tpu.memory_space<vmem>>, vector<1x2x256xf32>
    %162 = vector.shape_cast %161 : vector<1x2x256xf32> to vector<2x256xf32>
    %163 = arith.mulf %162, %38 : vector<2x256xf32>
    %164 = arith.addf %155, %163 : vector<2x256xf32>
    %c255_i32 = arith.constant 255 : i32
    %165 = tpu.dynamic_rotate %38 by %c255_i32 dim 1 : vector<2x256xf32>, i32 -> vector<2x256xf32>
    %c25 = arith.constant 25 : index
    %c0_81 = arith.constant 0 : index
    %c0_82 = arith.constant 0 : index
    %166 = vector.load %arg4[%c25, %c0_81, %c0_82] : memref<49x2x256xf32, #tpu.memory_space<vmem>>, vector<1x2x256xf32>
    %167 = vector.shape_cast %166 : vector<1x2x256xf32> to vector<2x256xf32>
    %168 = arith.mulf %167, %165 : vector<2x256xf32>
    %169 = arith.addf %160, %168 : vector<2x256xf32>
    %c254_i32 = arith.constant 254 : i32
    %170 = tpu.dynamic_rotate %38 by %c254_i32 dim 1 : vector<2x256xf32>, i32 -> vector<2x256xf32>
    %c26 = arith.constant 26 : index
    %c0_83 = arith.constant 0 : index
    %c0_84 = arith.constant 0 : index
    %171 = vector.load %arg4[%c26, %c0_83, %c0_84] : memref<49x2x256xf32, #tpu.memory_space<vmem>>, vector<1x2x256xf32>
    %172 = vector.shape_cast %171 : vector<1x2x256xf32> to vector<2x256xf32>
    %173 = arith.mulf %172, %170 : vector<2x256xf32>
    %174 = arith.addf %164, %173 : vector<2x256xf32>
    %c253_i32 = arith.constant 253 : i32
    %175 = tpu.dynamic_rotate %38 by %c253_i32 dim 1 : vector<2x256xf32>, i32 -> vector<2x256xf32>
    %c27 = arith.constant 27 : index
    %c0_85 = arith.constant 0 : index
    %c0_86 = arith.constant 0 : index
    %176 = vector.load %arg4[%c27, %c0_85, %c0_86] : memref<49x2x256xf32, #tpu.memory_space<vmem>>, vector<1x2x256xf32>
    %177 = vector.shape_cast %176 : vector<1x2x256xf32> to vector<2x256xf32>
    %178 = arith.mulf %177, %175 : vector<2x256xf32>
    %179 = arith.addf %169, %178 : vector<2x256xf32>
    %c243_i32 = arith.constant 243 : i32
    %180 = tpu.dynamic_rotate %38 by %c243_i32 dim 1 : vector<2x256xf32>, i32 -> vector<2x256xf32>
    %c28 = arith.constant 28 : index
    %c0_87 = arith.constant 0 : index
    %c0_88 = arith.constant 0 : index
    %181 = vector.load %arg4[%c28, %c0_87, %c0_88] : memref<49x2x256xf32, #tpu.memory_space<vmem>>, vector<1x2x256xf32>
    %182 = vector.shape_cast %181 : vector<1x2x256xf32> to vector<2x256xf32>
    %183 = arith.mulf %182, %180 : vector<2x256xf32>
    %184 = arith.addf %174, %183 : vector<2x256xf32>
    %c242_i32 = arith.constant 242 : i32
    %185 = tpu.dynamic_rotate %38 by %c242_i32 dim 1 : vector<2x256xf32>, i32 -> vector<2x256xf32>
    %c29 = arith.constant 29 : index
    %c0_89 = arith.constant 0 : index
    %c0_90 = arith.constant 0 : index
    %186 = vector.load %arg4[%c29, %c0_89, %c0_90] : memref<49x2x256xf32, #tpu.memory_space<vmem>>, vector<1x2x256xf32>
    %187 = vector.shape_cast %186 : vector<1x2x256xf32> to vector<2x256xf32>
    %188 = arith.mulf %187, %185 : vector<2x256xf32>
    %189 = arith.addf %179, %188 : vector<2x256xf32>
    %c241_i32 = arith.constant 241 : i32
    %190 = tpu.dynamic_rotate %38 by %c241_i32 dim 1 : vector<2x256xf32>, i32 -> vector<2x256xf32>
    %c30 = arith.constant 30 : index
    %c0_91 = arith.constant 0 : index
    %c0_92 = arith.constant 0 : index
    %191 = vector.load %arg4[%c30, %c0_91, %c0_92] : memref<49x2x256xf32, #tpu.memory_space<vmem>>, vector<1x2x256xf32>
    %192 = vector.shape_cast %191 : vector<1x2x256xf32> to vector<2x256xf32>
    %193 = arith.mulf %192, %190 : vector<2x256xf32>
    %194 = arith.addf %184, %193 : vector<2x256xf32>
    %c240_i32 = arith.constant 240 : i32
    %195 = tpu.dynamic_rotate %38 by %c240_i32 dim 1 : vector<2x256xf32>, i32 -> vector<2x256xf32>
    %c31 = arith.constant 31 : index
    %c0_93 = arith.constant 0 : index
    %c0_94 = arith.constant 0 : index
    %196 = vector.load %arg4[%c31, %c0_93, %c0_94] : memref<49x2x256xf32, #tpu.memory_space<vmem>>, vector<1x2x256xf32>
    %197 = vector.shape_cast %196 : vector<1x2x256xf32> to vector<2x256xf32>
    %198 = arith.mulf %197, %195 : vector<2x256xf32>
    %199 = arith.addf %189, %198 : vector<2x256xf32>
    %c239_i32 = arith.constant 239 : i32
    %200 = tpu.dynamic_rotate %38 by %c239_i32 dim 1 : vector<2x256xf32>, i32 -> vector<2x256xf32>
    %c32 = arith.constant 32 : index
    %c0_95 = arith.constant 0 : index
    %c0_96 = arith.constant 0 : index
    %201 = vector.load %arg4[%c32, %c0_95, %c0_96] : memref<49x2x256xf32, #tpu.memory_space<vmem>>, vector<1x2x256xf32>
    %202 = vector.shape_cast %201 : vector<1x2x256xf32> to vector<2x256xf32>
    %203 = arith.mulf %202, %200 : vector<2x256xf32>
    %204 = arith.addf %194, %203 : vector<2x256xf32>
    %c238_i32 = arith.constant 238 : i32
    %205 = tpu.dynamic_rotate %38 by %c238_i32 dim 1 : vector<2x256xf32>, i32 -> vector<2x256xf32>
    %c33 = arith.constant 33 : index
    %c0_97 = arith.constant 0 : index
    %c0_98 = arith.constant 0 : index
    %206 = vector.load %arg4[%c33, %c0_97, %c0_98] : memref<49x2x256xf32, #tpu.memory_space<vmem>>, vector<1x2x256xf32>
    %207 = vector.shape_cast %206 : vector<1x2x256xf32> to vector<2x256xf32>
    %208 = arith.mulf %207, %205 : vector<2x256xf32>
    %209 = arith.addf %199, %208 : vector<2x256xf32>
    %c237_i32 = arith.constant 237 : i32
    %210 = tpu.dynamic_rotate %38 by %c237_i32 dim 1 : vector<2x256xf32>, i32 -> vector<2x256xf32>
    %c34 = arith.constant 34 : index
    %c0_99 = arith.constant 0 : index
    %c0_100 = arith.constant 0 : index
    %211 = vector.load %arg4[%c34, %c0_99, %c0_100] : memref<49x2x256xf32, #tpu.memory_space<vmem>>, vector<1x2x256xf32>
    %212 = vector.shape_cast %211 : vector<1x2x256xf32> to vector<2x256xf32>
    %213 = arith.mulf %212, %210 : vector<2x256xf32>
    %214 = arith.addf %204, %213 : vector<2x256xf32>
    %c227_i32 = arith.constant 227 : i32
    %215 = tpu.dynamic_rotate %38 by %c227_i32 dim 1 : vector<2x256xf32>, i32 -> vector<2x256xf32>
    %c35 = arith.constant 35 : index
    %c0_101 = arith.constant 0 : index
    %c0_102 = arith.constant 0 : index
    %216 = vector.load %arg4[%c35, %c0_101, %c0_102] : memref<49x2x256xf32, #tpu.memory_space<vmem>>, vector<1x2x256xf32>
    %217 = vector.shape_cast %216 : vector<1x2x256xf32> to vector<2x256xf32>
    %218 = arith.mulf %217, %215 : vector<2x256xf32>
    %219 = arith.addf %209, %218 : vector<2x256xf32>
    %c226_i32 = arith.constant 226 : i32
    %220 = tpu.dynamic_rotate %38 by %c226_i32 dim 1 : vector<2x256xf32>, i32 -> vector<2x256xf32>
    %c36 = arith.constant 36 : index
    %c0_103 = arith.constant 0 : index
    %c0_104 = arith.constant 0 : index
    %221 = vector.load %arg4[%c36, %c0_103, %c0_104] : memref<49x2x256xf32, #tpu.memory_space<vmem>>, vector<1x2x256xf32>
    %222 = vector.shape_cast %221 : vector<1x2x256xf32> to vector<2x256xf32>
    %223 = arith.mulf %222, %220 : vector<2x256xf32>
    %224 = arith.addf %214, %223 : vector<2x256xf32>
    %c225_i32 = arith.constant 225 : i32
    %225 = tpu.dynamic_rotate %38 by %c225_i32 dim 1 : vector<2x256xf32>, i32 -> vector<2x256xf32>
    %c37 = arith.constant 37 : index
    %c0_105 = arith.constant 0 : index
    %c0_106 = arith.constant 0 : index
    %226 = vector.load %arg4[%c37, %c0_105, %c0_106] : memref<49x2x256xf32, #tpu.memory_space<vmem>>, vector<1x2x256xf32>
    %227 = vector.shape_cast %226 : vector<1x2x256xf32> to vector<2x256xf32>
    %228 = arith.mulf %227, %225 : vector<2x256xf32>
    %229 = arith.addf %219, %228 : vector<2x256xf32>
    %c224_i32 = arith.constant 224 : i32
    %230 = tpu.dynamic_rotate %38 by %c224_i32 dim 1 : vector<2x256xf32>, i32 -> vector<2x256xf32>
    %c38 = arith.constant 38 : index
    %c0_107 = arith.constant 0 : index
    %c0_108 = arith.constant 0 : index
    %231 = vector.load %arg4[%c38, %c0_107, %c0_108] : memref<49x2x256xf32, #tpu.memory_space<vmem>>, vector<1x2x256xf32>
    %232 = vector.shape_cast %231 : vector<1x2x256xf32> to vector<2x256xf32>
    %233 = arith.mulf %232, %230 : vector<2x256xf32>
    %234 = arith.addf %224, %233 : vector<2x256xf32>
    %c223_i32 = arith.constant 223 : i32
    %235 = tpu.dynamic_rotate %38 by %c223_i32 dim 1 : vector<2x256xf32>, i32 -> vector<2x256xf32>
    %c39 = arith.constant 39 : index
    %c0_109 = arith.constant 0 : index
    %c0_110 = arith.constant 0 : index
    %236 = vector.load %arg4[%c39, %c0_109, %c0_110] : memref<49x2x256xf32, #tpu.memory_space<vmem>>, vector<1x2x256xf32>
    %237 = vector.shape_cast %236 : vector<1x2x256xf32> to vector<2x256xf32>
    %238 = arith.mulf %237, %235 : vector<2x256xf32>
    %239 = arith.addf %229, %238 : vector<2x256xf32>
    %c222_i32 = arith.constant 222 : i32
    %240 = tpu.dynamic_rotate %38 by %c222_i32 dim 1 : vector<2x256xf32>, i32 -> vector<2x256xf32>
    %c40 = arith.constant 40 : index
    %c0_111 = arith.constant 0 : index
    %c0_112 = arith.constant 0 : index
    %241 = vector.load %arg4[%c40, %c0_111, %c0_112] : memref<49x2x256xf32, #tpu.memory_space<vmem>>, vector<1x2x256xf32>
    %242 = vector.shape_cast %241 : vector<1x2x256xf32> to vector<2x256xf32>
    %243 = arith.mulf %242, %240 : vector<2x256xf32>
    %244 = arith.addf %234, %243 : vector<2x256xf32>
    %c221_i32 = arith.constant 221 : i32
    %245 = tpu.dynamic_rotate %38 by %c221_i32 dim 1 : vector<2x256xf32>, i32 -> vector<2x256xf32>
    %c41 = arith.constant 41 : index
    %c0_113 = arith.constant 0 : index
    %c0_114 = arith.constant 0 : index
    %246 = vector.load %arg4[%c41, %c0_113, %c0_114] : memref<49x2x256xf32, #tpu.memory_space<vmem>>, vector<1x2x256xf32>
    %247 = vector.shape_cast %246 : vector<1x2x256xf32> to vector<2x256xf32>
    %248 = arith.mulf %247, %245 : vector<2x256xf32>
    %249 = arith.addf %239, %248 : vector<2x256xf32>
    %c211_i32 = arith.constant 211 : i32
    %250 = tpu.dynamic_rotate %38 by %c211_i32 dim 1 : vector<2x256xf32>, i32 -> vector<2x256xf32>
    %c42 = arith.constant 42 : index
    %c0_115 = arith.constant 0 : index
    %c0_116 = arith.constant 0 : index
    %251 = vector.load %arg4[%c42, %c0_115, %c0_116] : memref<49x2x256xf32, #tpu.memory_space<vmem>>, vector<1x2x256xf32>
    %252 = vector.shape_cast %251 : vector<1x2x256xf32> to vector<2x256xf32>
    %253 = arith.mulf %252, %250 : vector<2x256xf32>
    %254 = arith.addf %244, %253 : vector<2x256xf32>
    %c210_i32 = arith.constant 210 : i32
    %255 = tpu.dynamic_rotate %38 by %c210_i32 dim 1 : vector<2x256xf32>, i32 -> vector<2x256xf32>
    %c43 = arith.constant 43 : index
    %c0_117 = arith.constant 0 : index
    %c0_118 = arith.constant 0 : index
    %256 = vector.load %arg4[%c43, %c0_117, %c0_118] : memref<49x2x256xf32, #tpu.memory_space<vmem>>, vector<1x2x256xf32>
    %257 = vector.shape_cast %256 : vector<1x2x256xf32> to vector<2x256xf32>
    %258 = arith.mulf %257, %255 : vector<2x256xf32>
    %259 = arith.addf %249, %258 : vector<2x256xf32>
    %c209_i32 = arith.constant 209 : i32
    %260 = tpu.dynamic_rotate %38 by %c209_i32 dim 1 : vector<2x256xf32>, i32 -> vector<2x256xf32>
    %c44 = arith.constant 44 : index
    %c0_119 = arith.constant 0 : index
    %c0_120 = arith.constant 0 : index
    %261 = vector.load %arg4[%c44, %c0_119, %c0_120] : memref<49x2x256xf32, #tpu.memory_space<vmem>>, vector<1x2x256xf32>
    %262 = vector.shape_cast %261 : vector<1x2x256xf32> to vector<2x256xf32>
    %263 = arith.mulf %262, %260 : vector<2x256xf32>
    %264 = arith.addf %254, %263 : vector<2x256xf32>
    %c208_i32 = arith.constant 208 : i32
    %265 = tpu.dynamic_rotate %38 by %c208_i32 dim 1 : vector<2x256xf32>, i32 -> vector<2x256xf32>
    %c45 = arith.constant 45 : index
    %c0_121 = arith.constant 0 : index
    %c0_122 = arith.constant 0 : index
    %266 = vector.load %arg4[%c45, %c0_121, %c0_122] : memref<49x2x256xf32, #tpu.memory_space<vmem>>, vector<1x2x256xf32>
    %267 = vector.shape_cast %266 : vector<1x2x256xf32> to vector<2x256xf32>
    %268 = arith.mulf %267, %265 : vector<2x256xf32>
    %269 = arith.addf %259, %268 : vector<2x256xf32>
    %c207_i32 = arith.constant 207 : i32
    %270 = tpu.dynamic_rotate %38 by %c207_i32 dim 1 : vector<2x256xf32>, i32 -> vector<2x256xf32>
    %c46 = arith.constant 46 : index
    %c0_123 = arith.constant 0 : index
    %c0_124 = arith.constant 0 : index
    %271 = vector.load %arg4[%c46, %c0_123, %c0_124] : memref<49x2x256xf32, #tpu.memory_space<vmem>>, vector<1x2x256xf32>
    %272 = vector.shape_cast %271 : vector<1x2x256xf32> to vector<2x256xf32>
    %273 = arith.mulf %272, %270 : vector<2x256xf32>
    %274 = arith.addf %264, %273 : vector<2x256xf32>
    %c206_i32 = arith.constant 206 : i32
    %275 = tpu.dynamic_rotate %38 by %c206_i32 dim 1 : vector<2x256xf32>, i32 -> vector<2x256xf32>
    %c47 = arith.constant 47 : index
    %c0_125 = arith.constant 0 : index
    %c0_126 = arith.constant 0 : index
    %276 = vector.load %arg4[%c47, %c0_125, %c0_126] : memref<49x2x256xf32, #tpu.memory_space<vmem>>, vector<1x2x256xf32>
    %277 = vector.shape_cast %276 : vector<1x2x256xf32> to vector<2x256xf32>
    %278 = arith.mulf %277, %275 : vector<2x256xf32>
    %279 = arith.addf %269, %278 : vector<2x256xf32>
    %c205_i32 = arith.constant 205 : i32
    %280 = tpu.dynamic_rotate %38 by %c205_i32 dim 1 : vector<2x256xf32>, i32 -> vector<2x256xf32>
    %c48 = arith.constant 48 : index
    %c0_127 = arith.constant 0 : index
    %c0_128 = arith.constant 0 : index
    %281 = vector.load %arg4[%c48, %c0_127, %c0_128] : memref<49x2x256xf32, #tpu.memory_space<vmem>>, vector<1x2x256xf32>
    %282 = vector.shape_cast %281 : vector<1x2x256xf32> to vector<2x256xf32>
    %283 = arith.mulf %282, %280 : vector<2x256xf32>
    %284 = arith.addf %274, %283 : vector<2x256xf32>
    %285 = arith.addf %284, %279 : vector<2x256xf32>
    %cst_129 = arith.constant dense<0.000000e+00> : vector<256xf32>
    %286 = vector.multi_reduction <add>, %285, %cst_129 [0] : vector<2x256xf32> to vector<256xf32>
    %287 = vector.shape_cast %286 : vector<256xf32> to vector<1x256xf32>
    %288 = arith.negf %287 : vector<1x256xf32>
    %289 = math.exp %288 : vector<1x256xf32>
    %cst_130 = arith.constant 1.000000e+00 : f32
    %290 = vector.broadcast %cst_130 : f32 to vector<1x256xf32>
    %291 = arith.addf %290, %289 : vector<1x256xf32>
    %292 = arith.divf %290, %291 : vector<1x256xf32>
    %c0_131 = arith.constant 0 : index
    %c0_132 = arith.constant 0 : index
    %c0_133 = arith.constant 0 : index
    %293 = vector.load %arg1[%c0_131, %c0_132, %c0_133] : memref<1x4x256xf32, #tpu.memory_space<vmem>>, vector<1x4x256xf32>
    %294 = vector.shape_cast %293 : vector<1x4x256xf32> to vector<4x256xf32>
    %c0_134 = arith.constant 0 : index
    %c0_135 = arith.constant 0 : index
    %295 = vector.load %arg7[%c0_134, %c0_135] : memref<8x1xf32, #tpu.memory_space<vmem>>, vector<4x1xf32>
    %296 = vector.broadcast %295 : vector<4x1xf32> to vector<4x256xf32>
    %297 = arith.mulf %294, %296 : vector<4x256xf32>
    %298 = vector.broadcast %292 : vector<1x256xf32> to vector<4x256xf32>
    %299 = arith.mulf %297, %298 : vector<4x256xf32>
    %c0_136 = arith.constant 0 : index
    %c0_137 = arith.constant 0 : index
    %c0_138 = arith.constant 0 : index
    %300 = vector.load %arg5[%c0_136, %c0_137, %c0_138] : memref<1x4x256xf32, #tpu.memory_space<vmem>>, vector<1x4x256xf32>
    %301 = vector.shape_cast %300 : vector<1x4x256xf32> to vector<4x256xf32>
    %302 = vector.shape_cast %299 : vector<4x256xf32> to vector<1x4x256xf32>
    tpu.vector_store %arg5[%c0_136, %c0_137, %c0_138], %302 {strides = array<i32>} : memref<1x4x256xf32, #tpu.memory_space<vmem>>, vector<1x4x256xf32>,
    return
  }
  func.func @transform_0(%arg0: i32) -> (i32, i32, i32) {
    %c0_i32 = arith.constant 0 : i32
    %c0_i32_0 = arith.constant 0 : i32
    %c0_i32_1 = arith.constant 0 : i32
    return %arg0, %c0_i32, %c0_i32_0 : i32, i32, i32
  }
  func.func @transform_1(%arg0: i32) -> (i32, i32) {
    %c0_i32 = arith.constant 0 : i32
    %c0_i32_0 = arith.constant 0 : i32
    %c0_i32_1 = arith.constant 0 : i32
    return %c0_i32, %c0_i32_0 : i32, i32
  }
  func.func @transform_2(%arg0: i32) -> (i32, i32) {
    %c0_i32 = arith.constant 0 : i32
    %c0_i32_0 = arith.constant 0 : i32
    %c0_i32_1 = arith.constant 0 : i32
    return %c0_i32, %c0_i32_0 : i32, i32
  }
  func.func @transform_3(%arg0: i32) -> (i32, i32, i32) {
    %c0_i32 = arith.constant 0 : i32
    %c0_i32_0 = arith.constant 0 : i32
    %c0_i32_1 = arith.constant 0 : i32
    %c0_i32_2 = arith.constant 0 : i32
    return %c0_i32, %c0_i32_0, %c0_i32_1 : i32, i32, i32
  }
  func.func @transform_4(%arg0: i32) -> (i32, i32, i32) {
    %c0_i32 = arith.constant 0 : i32
    %c0_i32_0 = arith.constant 0 : i32
    %c0_i32_1 = arith.constant 0 : i32
    return %arg0, %c0_i32, %c0_i32_0 : i32, i32, i32
  }
}

</mosaic_0001>

<llo_original>
// kernel: tpu_custom_call.1
$region0: #{tpu_custom_call.1}
  #allocation0 [shape = 'u32[]', space=smem, size = 0x4, offset = 0x4, fixed_abs, tag = 'smem constant byte address 0x4 - core index']
  #allocation1 [shape = 'u32[72,128]{1,0:T(1,128)}', space=vmem, size = 0x9000, scoped, tag = 'internal scratch']
  #allocation2 [shape = 'f32[128,1]{1,0:T(8,128)}', space=vmem, size = 0x10000, scoped, tag = 'scratch operand']
  #allocation3 [shape = 'f32[8,1]{1,0:T(8,128)}', space=vmem, size = 0x1000, scoped, tag = 'scratch operand']
  %s0 = inlined_call_operand.hbm [shape: f32[2,4,256], index: 0, kind: input, shape index: {}]
  %s1 = inlined_call_operand.vmem [shape: f32[8,128], index: 1, kind: input, shape index: {}]
  %s2 = inlined_call_operand.vmem [shape: f32[8,1], index: 2, kind: input, shape index: {}]
  %s3 = inlined_call_operand.hbm [shape: f32[49,2,256], index: 3, kind: input, shape index: {}]
  %s4 = inlined_call_operand.hbm [shape: f32[2,4,256], index: 4, kind: output, shape index: {}]
  %s5 = sld [smem:[#allocation0]]
  $region57: #{tpu_custom_call.1} parent=0
    _
  %s7 = ssub.s32 1, %s5
  %s8 = scalar_select 0, %s7, %s5
  $region1: #{tpu_custom_call.1} parent=0
    #allocation4 [shape = 'u8[8192]{0}', space=vmem, size = 0x2000, scoped, tag = 'input window, operand 0']
    #allocation5 [shape = 's32[2]{0}', space=sflag, size = 0x8, scoped, tag = 'scoped memory for tpu_custom_call.1']
    #allocation6 [shape = 's32[2]{0}', space=sflag, size = 0x8, scoped, tag = 'scoped memory for tpu_custom_call.1']
    #allocation7 [shape = 'u8[100352]{0}', space=vmem, size = 0x18800, scoped, tag = 'input window, operand 3, single buffered']
    #allocation8 [shape = 's32[1]{0}', space=sflag, size = 0x4, scoped, tag = 'scoped memory for tpu_custom_call.1']
    #allocation9 [shape = 'u8[8192]{0}', space=vmem, size = 0x2000, scoped, tag = 'output window, operand 0']
    %9 = vsyncpa [#allocation5], 0
    %s10 = scalar_lea.sflag [#allocation5], 1
    %11 = vsyncpa %s10, 0
    %12 = vsyncpa [#allocation8], 0
    %13 = vsyncpa [#allocation6], 0
    %s14 = scalar_lea.sflag [#allocation6], 1
    %15 = vsyncpa %s14, 0
    loop: start=0, step=1, limit=4
    $region2: #{tpu_custom_call.1} parent=1 // loop_pre_header
      _
    $region3: #{tpu_custom_call.1} parent=1 // loop_header
      %s17 = sphi 0, %s21
      %p18 = scmp.ge.s32.totalorder %s17, 4
      %s27 = sphi 0, %s29
      %s30 = sphi 0, %s27
      %s31 = sphi 0, %s30
      %s47 = sphi 0, %s31
      %s51 = sphi 0, %s51
      %s53 = sphi 0, %s51
      %s54 = sphi 0, %s53
      %s68 = sphi 0, %s54
      %s72 = sphi 0, %s72
      %s74 = sphi 0, %s72
      %s75 = sphi 0, %s74
      %s89 = sphi 0, %s75
      %s93 = sphi 0, %s93
      %s95 = sphi 0, %s93
      %s96 = sphi 0, %s95
      %s110 = sphi 0, %s96
      %s116 = sphi 0, %s118
      %s119 = sphi 0, %s116
      %s120 = sphi 0, %s119
      %s136 = sphi 0, %s120
    $region4: #{tpu_custom_call.1} parent=1 // loop_header_branch
      %20 = sbr.rel (%p18) target = $region8
    $region5: #{tpu_custom_call.1} parent=1 // loop_body
      %s22 = ssub.s32 %s17, 1
      %s23 = ssub.s32 %s17, 2
      %s24 = sadd.s32 %s17, 1
      %s25 = ssub.s32 %s17, %s24
      %p26 = scmp.eq.s32.totalorder %s25, 0
      %s28 = sadd.s32 %s27, 1
      %s29 = scalar_select %p26, %s27, %s28
      %p32 = pneg %p26
      %p33 = scmp.eq.s32.totalorder %s17, 1
      %p34 = por %p32, %p33
      %p35 = scmp.ne.s32.totalorder %s27, %s30
      %p36 = scmp.eq.s32.totalorder %s17, 0
      %p37 = por %p35, %p36
      %p38 = scmp.ne.s32.totalorder %s27, %s30
      %p39 = scmp.eq.s32.totalorder %s22, 1
      %p40 = por %p38, %p39
      %p41 = scmp.ne.s32.totalorder %s30, %s31
      %p42 = scmp.eq.s32.totalorder %s22, 0
      %p43 = por %p41, %p42
      %p44 = scmp.ne.s32.totalorder %s30, %s31
      %p45 = scmp.eq.s32.totalorder %s23, 1
      %p46 = por %p44, %p45
      %p48 = scmp.ne.s32.totalorder %s31, %s47
      %p49 = scmp.eq.s32.totalorder %s23, 0
      %p50 = por %p48, %p49
      %s52 = sadd.s32 %s51, 1
      %p55 = scmp.eq.s32.totalorder %s17, 1
      %p56 = scmp.ne.s32.totalorder %s51, %s53
      %p57 = scmp.eq.s32.totalorder %s17, 0
      %p58 = por %p56, %p57
      %p59 = scmp.ne.s32.totalorder %s51, %s53
      %p60 = scmp.eq.s32.totalorder %s22, 1
      %p61 = por %p59, %p60
      %p62 = scmp.ne.s32.totalorder %s53, %s54
      %p63 = scmp.eq.s32.totalorder %s22, 0
      %p64 = por %p62, %p63
      %p65 = scmp.ne.s32.totalorder %s53, %s54
      %p66 = scmp.eq.s32.totalorder %s23, 1
      %p67 = por %p65, %p66
      %p69 = scmp.ne.s32.totalorder %s54, %s68
      %p70 = scmp.eq.s32.totalorder %s23, 0
      %p71 = por %p69, %p70
      %s73 = sadd.s32 %s72, 1
      %p76 = scmp.eq.s32.totalorder %s17, 1
      %p77 = scmp.ne.s32.totalorder %s72, %s74
      %p78 = scmp.eq.s32.totalorder %s17, 0
      %p79 = por %p77, %p78
      %p80 = scmp.ne.s32.totalorder %s72, %s74
      %p81 = scmp.eq.s32.totalorder %s22, 1
      %p82 = por %p80, %p81
      %p83 = scmp.ne.s32.totalorder %s74, %s75
      %p84 = scmp.eq.s32.totalorder %s22, 0
      %p85 = por %p83, %p84
      %p86 = scmp.ne.s32.totalorder %s74, %s75
      %p87 = scmp.eq.s32.totalorder %s23, 1
      %p88 = por %p86, %p87
      %p90 = scmp.ne.s32.totalorder %s75, %s89
      %p91 = scmp.eq.s32.totalorder %s23, 0
      %p92 = por %p90, %p91
      %s94 = sadd.s32 %s93, 1
      %p97 = scmp.eq.s32.totalorder %s17, 1
      %p98 = scmp.ne.s32.totalorder %s93, %s95
      %p99 = scmp.eq.s32.totalorder %s17, 0
      %p100 = por %p98, %p99
      %p101 = scmp.ne.s32.totalorder %s93, %s95
      %p102 = scmp.eq.s32.totalorder %s22, 1
      %p103 = por %p101, %p102
      %p104 = scmp.ne.s32.totalorder %s95, %s96
      %p105 = scmp.eq.s32.totalorder %s22, 0
      %p106 = por %p104, %p105
      %p107 = scmp.ne.s32.totalorder %s95, %s96
      %p108 = scmp.eq.s32.totalorder %s23, 1
      %p109 = por %p107, %p108
      %p111 = scmp.ne.s32.totalorder %s96, %s110
      %p112 = scmp.eq.s32.totalorder %s23, 0
      %p113 = por %p111, %p112
      %s114 = ssub.s32 %s17, %s24
      %p115 = scmp.eq.s32.totalorder %s114, 0
      %s117 = sadd.s32 %s116, 1
      %s118 = scalar_select %p115, %s116, %s117
      %p121 = pneg %p115
      %p122 = scmp.eq.s32.totalorder %s17, 1
      %p123 = por %p121, %p122
      %p124 = scmp.ne.s32.totalorder %s116, %s119
      %p125 = scmp.eq.s32.totalorder %s17, 0
      %p126 = por %p124, %p125
      %p127 = scmp.ne.s32.totalorder %s116, %s119
      %p128 = scmp.eq.s32.totalorder %s22, 1
      %p129 = por %p127, %p128
      %p130 = scmp.ne.s32.totalorder %s119, %s120
      %p131 = scmp.eq.s32.totalorder %s22, 0
      %p132 = por %p130, %p131
      %p133 = scmp.ne.s32.totalorder %s119, %s120
      %p134 = scmp.eq.s32.totalorder %s23, 1
      %p135 = por %p133, %p134
      %p137 = scmp.ne.s32.totalorder %s120, %s136
      %p138 = scmp.eq.s32.totalorder %s23, 0
      %p139 = por %p137, %p138
      %p140 = scmp.le.s32.totalorder 1, %s17
      %p141 = scmp.lt.s32.totalorder %s17, 3
      %p142 = pnand %p140, %p141
      %p143 = pneg %p142
      // Predicated region
      $region9: #{tpu_custom_call.1} parent=5 // pred_check
        _
      $region10: #{tpu_custom_call.1} parent=5 // pred_check_branch
        %145 = sbr.rel (%p142) target = $region12
      $region11: #{tpu_custom_call.1} parent=5 // pred_region
        %s146 = ssub.s32 %s17, 1
        // Predicated region
        $region13: #{tpu_custom_call.1} parent=11 // pred_check
          %p147 = pneg %p64
        $region14: #{tpu_custom_call.1} parent=11 // pred_check_branch
          %149 = sbr.rel (%p147) target = $region16
        $region15: #{tpu_custom_call.1} parent=11 // pred_region
          _
        $region16: #{tpu_custom_call.1} parent=11 // pred_fallthru
          _
        // Predicated region
        $region17: #{tpu_custom_call.1} parent=11 // pred_check
          %p150 = pneg %p85
        $region18: #{tpu_custom_call.1} parent=11 // pred_check_branch
          %152 = sbr.rel (%p150) target = $region20
        $region19: #{tpu_custom_call.1} parent=11 // pred_region
          _
        $region20: #{tpu_custom_call.1} parent=11 // pred_fallthru
          _
        // Predicated region
        $region21: #{tpu_custom_call.1} parent=11 // pred_check
          %p153 = pneg %p106
        $region22: #{tpu_custom_call.1} parent=11 // pred_check_branch
          %155 = sbr.rel (%p153) target = $region24
        $region23: #{tpu_custom_call.1} parent=11 // pred_region
          %157 = vsyncadd [#allocation8], 0
          %s158 = sshll.u32 %s3, 4
          %s159 = int_to_ptr.hbm [resolvable:$true] %s158
          %s160 = sshll.u32 [#allocation7], 4
          %s161 = int_to_ptr.vmem [resolvable:$true] %s160
          %166 = dma.hbm_to_vmem [thread:$0]  %s159, 3136, %s161, [#allocation8], 64, 64, 4
        $region24: #{tpu_custom_call.1} parent=11 // pred_fallthru
          _
      $region12: #{tpu_custom_call.1} parent=5 // pred_fallthru
        _
      %p167 = scmp.lt.s32.totalorder %s17, 2
      // Predicated region
      $region25: #{tpu_custom_call.1} parent=5 // pred_check
        %p168 = pneg %p167
      $region26: #{tpu_custom_call.1} parent=5 // pred_check_branch
        %170 = sbr.rel (%p168) target = $region28
      $region27: #{tpu_custom_call.1} parent=5 // pred_region
        // Predicated region
        $region29: #{tpu_custom_call.1} parent=27 // pred_check
          %p171 = pneg %p37
        $region30: #{tpu_custom_call.1} parent=27 // pred_check_branch
          %173 = sbr.rel (%p171) target = $region32
        $region31: #{tpu_custom_call.1} parent=27 // pred_region
          %s174 = sand.u32 %s27, 1
          %s175 = scalar_lea.sflag [#allocation5], %s174
          %s176 = sand.u32 %s27, 1
          %s177 = smul.addr %s176, 8
          %s178 = scalar_lea.vmem [#allocation4], %s177
          %180 = vsyncadd %s175, 0
          %s181 = smul.addr %s17, 2
          %s182 = smul.addr %s181, 4
          %s183 = scalar_lea.hbm %s0, %s182
          %s185 = sshll.u32 %s183, 4
          %s186 = int_to_ptr.hbm [resolvable:$true] %s185
          %s187 = sshll.u32 %s178, 4
          %s188 = int_to_ptr.vmem [resolvable:$true] %s187
          %190 = dma.hbm_to_vmem [thread:$0]  %s186, 128, %s188, %s175
        $region32: #{tpu_custom_call.1} parent=27 // pred_fallthru
          _
      $region28: #{tpu_custom_call.1} parent=5 // pred_fallthru
        _
      %p191 = scmp.le.s32.totalorder 1, %s17
      %p192 = scmp.lt.s32.totalorder %s17, 3
      %p193 = pnand %p191, %p192
      %p194 = pneg %p193
      // Predicated region
      $region33: #{tpu_custom_call.1} parent=5 // pred_check
        _
      $region34: #{tpu_custom_call.1} parent=5 // pred_check_branch
        %196 = sbr.rel (%p193) target = $region36
      $region35: #{tpu_custom_call.1} parent=5 // pred_region
        %s197 = ssub.s32 %s17, 1
        %s198 = sand.u32 %s30, 1
        %s199 = scalar_lea.sflag [#allocation5], %s198
        %s200 = sand.u32 %s30, 1
        %s201 = smul.addr %s200, 8
        %s202 = scalar_lea.vmem [#allocation4], %s201
        // Predicated region
        $region37: #{tpu_custom_call.1} parent=35 // pred_check
          %p203 = pneg %p43
        $region38: #{tpu_custom_call.1} parent=35 // pred_check_branch
          %205 = sbr.rel (%p203) target = $region40
        $region39: #{tpu_custom_call.1} parent=35 // pred_region
          %207 = dma.done %s199, 128
        $region40: #{tpu_custom_call.1} parent=35 // pred_fallthru
          _
        // Predicated region
        $region41: #{tpu_custom_call.1} parent=35 // pred_check
          %p208 = pneg %p106
        $region42: #{tpu_custom_call.1} parent=35 // pred_check_branch
          %210 = sbr.rel (%p208) target = $region44
        $region43: #{tpu_custom_call.1} parent=35 // pred_region
          %212 = dma.done [#allocation8], 3136
        $region44: #{tpu_custom_call.1} parent=35 // pred_fallthru
          _
        %s213 = sand.u32 %s30, 1
        %s214 = scalar_lea.sflag [#allocation5], %s213
        %s215 = sand.u32 %s30, 1
        %s216 = smul.addr %s215, 8
        %s217 = scalar_lea.vmem [#allocation4], %s216
        %p218 = pneg %p43
        %p219 = pneg %p40
        %p220 = pneg %p64
        %p221 = pneg %p61
        %p222 = pneg %p85
        %p223 = pneg %p82
        %p224 = pneg %p106
        %p225 = pneg %p103
        %p226 = pneg %p132
        %p227 = pneg %p129
        %s228 = sand.u32 %s119, 1
        %s229 = scalar_lea.sflag [#allocation6], %s228
        %s230 = sand.u32 %s119, 1
        %s231 = smul.addr %s230, 8
        %s232 = scalar_lea.vmem [#allocation9], %s231
        %vm233 = vcmask 7168
        %234 = vst.msk [vmem:[#allocation2] sm:$0xff] %vm233, 0.0
        %235 = vst.msk [vmem:[#allocation2 + $0x8] sm:$0xff] %vm233, 0.0
        %236 = vst.msk [vmem:[#allocation2 + $0x10] sm:$0xff] %vm233, 0.0
        %237 = vst.msk [vmem:[#allocation2 + $0x18] sm:$0xff] %vm233, 0.0
        %238 = vst.msk [vmem:[#allocation2 + $0x20] sm:$0xff] %vm233, 0.0
        %239 = vst.msk [vmem:[#allocation2 + $0x28] sm:$0xff] %vm233, 0.0
        %240 = vst.msk [vmem:[#allocation2 + $0x30] sm:$0xff] %vm233, 0.0
        %241 = vst.msk [vmem:[#allocation2 + $0x38] sm:$0xff] %vm233, 0.0
        %242 = vst.msk [vmem:[#allocation2 + $0x40] sm:$0xff] %vm233, 0.0
        %243 = vst.msk [vmem:[#allocation2 + $0x48] sm:$0xff] %vm233, 0.0
        %244 = vst.msk [vmem:[#allocation2 + $0x50] sm:$0xff] %vm233, 0.0
        %245 = vst.msk [vmem:[#allocation2 + $0x58] sm:$0xff] %vm233, 0.0
        %246 = vst.msk [vmem:[#allocation2 + $0x60] sm:$0xff] %vm233, 0.0
        %247 = vst.msk [vmem:[#allocation2 + $0x68] sm:$0xff] %vm233, 0.0
        %248 = vst.msk [vmem:[#allocation2 + $0x70] sm:$0xff] %vm233, 0.0
        %249 = vst.msk [vmem:[#allocation2 + $0x78] sm:$0xff] %vm233, 0.0
        %v250 = vld [vmem:[%s202] sm:$0xff]
        %252 = vst [vmem:[#allocation1] ss:$2 sm:$0xff] %v250
        %v253 = vld.sshfl [vmem:[#allocation1] sm:$0xff pattern:$0x75316420]
        %v254 = vld.sshfl [vmem:[#allocation1 + $0x8] sm:$0xff pattern:$0x75316420]
        %vm257 = vcmask 1043456
        %v258 = vsel %vm257, %v253, 0.0
        %v259 = vsel %vm257, %v254, 0.0
        %v260 = vadd.f32 %v258, %v259
        %261 = vadd.xlane.f32.xlu0 %v260
        %v262 = vpop.xlane.xlu0 %261
        %vm263 = vcmask 3072
        %264 = vst.msk [vmem:[#allocation2] sm:$0xf] %vm263, %v262
        %v265 = vld [vmem:[#allocation2] sm:$0xff]
        %v266 = vld [vmem:[#allocation2 + $0x8] sm:$0xff]
        %v267 = vld [vmem:[#allocation2 + $0x10] sm:$0xff]
        %v268 = vld [vmem:[#allocation2 + $0x18] sm:$0xff]
        %v269 = vld [vmem:[#allocation2 + $0x20] sm:$0xff]
        %v270 = vld [vmem:[#allocation2 + $0x28] sm:$0xff]
        %v271 = vld [vmem:[#allocation2 + $0x30] sm:$0xff]
        %v272 = vld [vmem:[#allocation2 + $0x38] sm:$0xff]
        %v273 = vld [vmem:[#allocation2 + $0x40] sm:$0xff]
        %v274 = vld [vmem:[#allocation2 + $0x48] sm:$0xff]
        %v275 = vld [vmem:[#allocation2 + $0x50] sm:$0xff]
        %v276 = vld [vmem:[#allocation2 + $0x58] sm:$0xff]
        %v277 = vld [vmem:[#allocation2 + $0x60] sm:$0xff]
        %v278 = vld [vmem:[#allocation2 + $0x68] sm:$0xff]
        %v279 = vld [vmem:[#allocation2 + $0x70] sm:$0xff]
        %v280 = vld [vmem:[#allocation2 + $0x78] sm:$0xff]
        %v281 = vmul.f32 %v265, 0.00390625
        %v282 = vmul.f32 %v266, 0.00390625
        %v283 = vmul.f32 %v267, 0.00390625
        %v284 = vmul.f32 %v268, 0.00390625
        %v285 = vmul.f32 %v269, 0.00390625
        %v286 = vmul.f32 %v270, 0.00390625
        %v287 = vmul.f32 %v271, 0.00390625
        %v288 = vmul.f32 %v272, 0.00390625
        %v289 = vmul.f32 %v273, 0.00390625
        %v290 = vmul.f32 %v274, 0.00390625
        %v291 = vmul.f32 %v275, 0.00390625
        %v292 = vmul.f32 %v276, 0.00390625
        %v293 = vmul.f32 %v277, 0.00390625
        %v294 = vmul.f32 %v278, 0.00390625
        %v295 = vmul.f32 %v279, 0.00390625
        %v296 = vmul.f32 %v280, 0.00390625
        %298 = vset.pattern.permute.xlu0 0
        %299 = vperm.xlu0 %298, %v281
        %v300 = vpop.permute.xlu0 %299
        %303 = vset.pattern.permute.xlu0 0
        %304 = vperm.xlu0 %303, %v282
        %v305 = vpop.permute.xlu0 %304
        %308 = vset.pattern.permute.xlu0 0
        %309 = vperm.xlu0 %308, %v283
        %v310 = vpop.permute.xlu0 %309
        %313 = vset.pattern.permute.xlu0 0
        %314 = vperm.xlu0 %313, %v284
        %v315 = vpop.permute.xlu0 %314
        %318 = vset.pattern.permute.xlu0 0
        %319 = vperm.xlu0 %318, %v285
        %v320 = vpop.permute.xlu0 %319
        %323 = vset.pattern.permute.xlu0 0
        %324 = vperm.xlu0 %323, %v286
        %v325 = vpop.permute.xlu0 %324
        %328 = vset.pattern.permute.xlu0 0
        %329 = vperm.xlu0 %328, %v287
        %v330 = vpop.permute.xlu0 %329
        %333 = vset.pattern.permute.xlu0 0
        %334 = vperm.xlu0 %333, %v288
        %v335 = vpop.permute.xlu0 %334
        %338 = vset.pattern.permute.xlu0 0
        %339 = vperm.xlu0 %338, %v289
        %v340 = vpop.permute.xlu0 %339
        %343 = vset.pattern.permute.xlu0 0
        %344 = vperm.xlu0 %343, %v290
        %v345 = vpop.permute.xlu0 %344
        %348 = vset.pattern.permute.xlu0 0
        %349 = vperm.xlu0 %348, %v291
        %v350 = vpop.permute.xlu0 %349
        %353 = vset.pattern.permute.xlu0 0
        %354 = vperm.xlu0 %353, %v292
        %v355 = vpop.permute.xlu0 %354
        %358 = vset.pattern.permute.xlu0 0
        %359 = vperm.xlu0 %358, %v293
        %v360 = vpop.permute.xlu0 %359
        %363 = vset.pattern.permute.xlu0 0
        %364 = vperm.xlu0 %363, %v294
        %v365 = vpop.permute.xlu0 %364
        %368 = vset.pattern.permute.xlu0 0
        %369 = vperm.xlu0 %368, %v295
        %v370 = vpop.permute.xlu0 %369
        %373 = vset.pattern.permute.xlu0 0
        %374 = vperm.xlu0 %373, %v296
        %v375 = vpop.permute.xlu0 %374
        %v377 = vld [vmem:[%s1] sm:$0xff]
        %378 = vmatpush.msra.mxu0 %v375
        %379 = vmatpush.msra.mxu0 %v370
        %380 = vmatpush.msra.mxu0 %v365
        %381 = vmatpush.msra.mxu0 %v360
        %382 = vmatpush.msra.mxu0 %v355
        %383 = vmatpush.msra.mxu0 %v350
        %384 = vmatpush.msra.mxu0 %v345
        %385 = vmatpush.msra.mxu0 %v340
        %386 = vmatpush.msra.mxu0 %v335
        %387 = vmatpush.msra.mxu0 %v330
        %388 = vmatpush.msra.mxu0 %v325
        %389 = vmatpush.msra.mxu0 %v320
        %390 = vmatpush.msra.mxu0 %v315
        %391 = vmatpush.msra.mxu0 %v310
        %392 = vmatpush.msra.mxu0 %v305
        %393 = vmatpush.msra.mxu0 %v300
        %394 = vmatmul.f32.gmra.mxu0 %v377
        %v395 = vpop.f32.mrf.mxu0
        %v396 = vadd.f32 0.0, %v395
        %397 = vdwg.mxu0
        %v398 = vld [vmem:[%s2] sm:$0xff]
        %v399 = vadd.f32 %v396, %v398
        %v400 = vxor.u32 %v399, 2147483648
        %v401 = vmul.f32 %v400, 1.442695
        %v402 = vpow.pop %v401
        %v403 = vadd.f32 %v402, 1.0
        %v404 = vrcp.pop %v403
        %v405 = vmul.f32 %v403, %v404
        %v406 = vsub.f32 1.0, %v405
        %v407 = vmul.f32 %v404, %v406
        %v408 = vadd.f32 %v404, %v407
        %vm409 = vweird.f32 %v403
        %vm410 = vweird.f32 %v404
        %vm411 = vmor %vm409, %vm410
        %v412 = vsel %vm411, %v404, %v408
        %v413 = vand.u32 2147483647, %v403
        %vm414 = vcmp.eq.f32.partialorder %v413, 8.507059e+37
        %v415 = vand.u32 %v403, 2147483648
        %v416 = vor.u32 1.1754944e-38, %v415
        %v417 = vsel %vm414, %v416, %v412
        %v418 = vmul.f32 1.0, %v417
        %419 = vst.msk [vmem:[#allocation3] sm:$0xff] %vm233, %v418
        %v420 = vld [vmem:[%s202] sm:$0xff]
        %v421 = vld [vmem:[#allocation3] sm:$0xf]
        %423 = vset.pattern.permute.xlu0 0
        %424 = vperm.xlu0 %423, %v421
        %v425 = vpop.permute.xlu0 %424
        %v427 = vunpack.c.l.s4 839922192
        %v428 = vunpack.c.0.s8 %v427
        %v429 = vperm.slane %v425, %v428
        %v431 = vmul.f32 %v420, %v429
        %433 = vst [vmem:[#allocation1] ss:$2 sm:$0xff] %v431
        %v434 = vld.sshfl [vmem:[#allocation1] sm:$0xff pattern:$0x75316420]
        %v435 = vld.sshfl [vmem:[#allocation1 + $0x8] sm:$0xff pattern:$0x75316420]
        %v438 = vsel %vm257, %v434, 0.0
        %v439 = vrot.slane %v438, 4
        %v440 = vadd.f32 %v438, %v439
        %v441 = vrot.slane %v440, 2
        %v442 = vadd.f32 %v440, %v441
        %v443 = vrot.slane %v442, 1
        %v444 = vadd.f32 %v442, %v443
        %v445 = vsel %vm257, %v435, 0.0
        %v446 = vrot.slane %v445, 4
        %v447 = vadd.f32 %v445, %v446
        %v448 = vrot.slane %v447, 2
        %v449 = vadd.f32 %v447, %v448
        %v450 = vrot.slane %v449, 1
        %v451 = vadd.f32 %v449, %v450
        %v452 = vadd.f32 %v444, 0.0
        %v453 = vadd.f32 %v451, 0.0
        %454 = vst [vmem:[#allocation1] ss:$2 sm:$0xff] %v431
        %v455 = vld.sshfl [vmem:[#allocation1] sm:$0xff pattern:$0x75316420]
        %v456 = vld.sshfl [vmem:[#allocation1 + $0x8] sm:$0xff pattern:$0x75316420]
        %v459 = vsel %vm257, %v455, -inf
        %v460 = vrot.slane %v459, 4
        %v461 = vmax.f32 %v459, %v460
        %v462 = vrot.slane %v461, 2
        %v463 = vmax.f32 %v461, %v462
        %v464 = vrot.slane %v463, 1
        %v465 = vmax.f32 %v463, %v464
        %v466 = vsel %vm257, %v456, -inf
        %v467 = vrot.slane %v466, 4
        %v468 = vmax.f32 %v466, %v467
        %v469 = vrot.slane %v468, 2
        %v470 = vmax.f32 %v468, %v469
        %v471 = vrot.slane %v470, 1
        %v472 = vmax.f32 %v470, %v471
        %v473 = vmul.f32 %v452, 0.25
        %v474 = vmul.f32 %v453, 0.25
        %vm475 = vcmask 1040384
        %v476 = vsel %vm475, %v473, %v465
        %v477 = vsel %vm475, %v474, %v472
        %478 = vrot.lane.b32.xlu0 %v476, 51
        %v479 = vpop.permute.xlu0 %478
        %480 = vrot.lane.b32.xlu0 %v477, 51
        %v481 = vpop.permute.xlu0 %480
        %v482 = vlaneseq
        %v483 = vand.u32 %v482, 127
        %vm484 = vcmp.lt.s32.totalorder %v483, 51
        %v485 = vsel %vm484, %v479, %v481
        %v486 = vsel %vm484, %v481, %v479
        %v487 = vld [vmem:[#allocation7] sm:$0xf]
        %v490 = vrot.slane %v485, 6
        %vm491 = vcmask 1041408
        %v492 = vsel %vm491, %v486, %v490
        %v494 = vmul.f32 %v487, %v492
        %v495 = vadd.f32 %v494, 0.0
        %496 = vrot.lane.b32.xlu0 %v476, 50
        %v497 = vpop.permute.xlu0 %496
        %498 = vrot.lane.b32.xlu0 %v477, 50
        %v499 = vpop.permute.xlu0 %498
        %vm500 = vcmp.lt.s32.totalorder %v483, 50
        %v501 = vsel %vm500, %v497, %v499
        %v502 = vsel %vm500, %v499, %v497
        %s503 = scalar_lea.vmem [#allocation7], 4
        %v504 = vld [vmem:[%s503] sm:$0xf]
        %v507 = vrot.slane %v501, 6
        %v508 = vsel %vm491, %v502, %v507
        %v510 = vmul.f32 %v504, %v508
        %v511 = vadd.f32 %v510, 0.0
        %512 = vrot.lane.b32.xlu0 %v476, 49
        %v513 = vpop.permute.xlu0 %512
        %514 = vrot.lane.b32.xlu0 %v477, 49
        %v515 = vpop.permute.xlu0 %514
        %vm516 = vcmp.lt.s32.totalorder %v483, 49
        %v517 = vsel %vm516, %v513, %v515
        %v518 = vsel %vm516, %v515, %v513
        %s519 = scalar_lea.vmem [#allocation7], 8
        %v520 = vld [vmem:[%s519] sm:$0xf]
        %v523 = vrot.slane %v517, 6
        %v524 = vsel %vm491, %v518, %v523
        %v526 = vmul.f32 %v520, %v524
        %v527 = vadd.f32 %v495, %v526
        %528 = vrot.lane.b32.xlu0 %v476, 48
        %v529 = vpop.permute.xlu0 %528
        %530 = vrot.lane.b32.xlu0 %v477, 48
        %v531 = vpop.permute.xlu0 %530
        %vm532 = vcmp.lt.s32.totalorder %v483, 48
        %v533 = vsel %vm532, %v529, %v531
        %v534 = vsel %vm532, %v531, %v529
        %s535 = scalar_lea.vmem [#allocation7], 12
        %v536 = vld [vmem:[%s535] sm:$0xf]
        %v539 = vrot.slane %v533, 6
        %v540 = vsel %vm491, %v534, %v539
        %v542 = vmul.f32 %v536, %v540
        %v543 = vadd.f32 %v511, %v542
        %544 = vrot.lane.b32.xlu0 %v476, 47
        %v545 = vpop.permute.xlu0 %544
        %546 = vrot.lane.b32.xlu0 %v477, 47
        %v547 = vpop.permute.xlu0 %546
        %vm548 = vcmp.lt.s32.totalorder %v483, 47
        %v549 = vsel %vm548, %v545, %v547
        %v550 = vsel %vm548, %v547, %v545
        %s551 = scalar_lea.vmem [#allocation7], 16
        %v552 = vld [vmem:[%s551] sm:$0xf]
        %v555 = vrot.slane %v549, 6
        %v556 = vsel %vm491, %v550, %v555
        %v558 = vmul.f32 %v552, %v556
        %v559 = vadd.f32 %v527, %v558
        %560 = vrot.lane.b32.xlu0 %v476, 46
        %v561 = vpop.permute.xlu0 %560
        %562 = vrot.lane.b32.xlu0 %v477, 46
        %v563 = vpop.permute.xlu0 %562
        %vm564 = vcmp.lt.s32.totalorder %v483, 46
        %v565 = vsel %vm564, %v561, %v563
        %v566 = vsel %vm564, %v563, %v561
        %s567 = scalar_lea.vmem [#allocation7], 20
        %v568 = vld [vmem:[%s567] sm:$0xf]
        %v571 = vrot.slane %v565, 6
        %v572 = vsel %vm491, %v566, %v571
        %v574 = vmul.f32 %v568, %v572
        %v575 = vadd.f32 %v543, %v574
        %576 = vrot.lane.b32.xlu0 %v476, 45
        %v577 = vpop.permute.xlu0 %576
        %578 = vrot.lane.b32.xlu0 %v477, 45
        %v579 = vpop.permute.xlu0 %578
        %vm580 = vcmp.lt.s32.totalorder %v483, 45
        %v581 = vsel %vm580, %v577, %v579
        %v582 = vsel %vm580, %v579, %v577
        %s583 = scalar_lea.vmem [#allocation7], 24
        %v584 = vld [vmem:[%s583] sm:$0xf]
        %v587 = vrot.slane %v581, 6
        %v588 = vsel %vm491, %v582, %v587
        %v590 = vmul.f32 %v584, %v588
        %v591 = vadd.f32 %v559, %v590
        %592 = vrot.lane.b32.xlu0 %v476, 35
        %v593 = vpop.permute.xlu0 %592
        %594 = vrot.lane.b32.xlu0 %v477, 35
        %v595 = vpop.permute.xlu0 %594
        %vm596 = vcmp.lt.s32.totalorder %v483, 35
        %v597 = vsel %vm596, %v593, %v595
        %v598 = vsel %vm596, %v595, %v593
        %s599 = scalar_lea.vmem [#allocation7], 28
        %v600 = vld [vmem:[%s599] sm:$0xf]
        %v603 = vrot.slane %v597, 6
        %v604 = vsel %vm491, %v598, %v603
        %v606 = vmul.f32 %v600, %v604
        %v607 = vadd.f32 %v575, %v606
        %608 = vrot.lane.b32.xlu0 %v476, 34
        %v609 = vpop.permute.xlu0 %608
        %610 = vrot.lane.b32.xlu0 %v477, 34
        %v611 = vpop.permute.xlu0 %610
        %vm612 = vcmp.lt.s32.totalorder %v483, 34
        %v613 = vsel %vm612, %v609, %v611
        %v614 = vsel %vm612, %v611, %v609
        %s615 = scalar_lea.vmem [#allocation7], 32
        %v616 = vld [vmem:[%s615] sm:$0xf]
        %v619 = vrot.slane %v613, 6
        %v620 = vsel %vm491, %v614, %v619
        %v622 = vmul.f32 %v616, %v620
        %v623 = vadd.f32 %v591, %v622
        %624 = vrot.lane.b32.xlu0 %v476, 33
        %v625 = vpop.permute.xlu0 %624
        %626 = vrot.lane.b32.xlu0 %v477, 33
        %v627 = vpop.permute.xlu0 %626
        %vm628 = vcmp.lt.s32.totalorder %v483, 33
        %v629 = vsel %vm628, %v625, %v627
        %v630 = vsel %vm628, %v627, %v625
        %s631 = scalar_lea.vmem [#allocation7], 36
        %v632 = vld [vmem:[%s631] sm:$0xf]
        %v635 = vrot.slane %v629, 6
        %v636 = vsel %vm491, %v630, %v635
        %v638 = vmul.f32 %v632, %v636
        %v639 = vadd.f32 %v607, %v638
        %640 = vrot.lane.b32.xlu0 %v476, 32
        %v641 = vpop.permute.xlu0 %640
        %642 = vrot.lane.b32.xlu0 %v477, 32
        %v643 = vpop.permute.xlu0 %642
        %vm644 = vcmp.lt.s32.totalorder %v483, 32
        %v645 = vsel %vm644, %v641, %v643
        %v646 = vsel %vm644, %v643, %v641
        %s647 = scalar_lea.vmem [#allocation7], 40
        %v648 = vld [vmem:[%s647] sm:$0xf]
        %v651 = vrot.slane %v645, 6
        %v652 = vsel %vm491, %v646, %v651
        %v654 = vmul.f32 %v648, %v652
        %v655 = vadd.f32 %v623, %v654
        %656 = vrot.lane.b32.xlu0 %v476, 31
        %v657 = vpop.permute.xlu0 %656
        %658 = vrot.lane.b32.xlu0 %v477, 31
        %v659 = vpop.permute.xlu0 %658
        %vm660 = vcmp.lt.s32.totalorder %v483, 31
        %v661 = vsel %vm660, %v657, %v659
        %v662 = vsel %vm660, %v659, %v657
        %s663 = scalar_lea.vmem [#allocation7], 44
        %v664 = vld [vmem:[%s663] sm:$0xf]
        %v667 = vrot.slane %v661, 6
        %v668 = vsel %vm491, %v662, %v667
        %v670 = vmul.f32 %v664, %v668
        %v671 = vadd.f32 %v639, %v670
        %672 = vrot.lane.b32.xlu0 %v476, 30
        %v673 = vpop.permute.xlu0 %672
        %674 = vrot.lane.b32.xlu0 %v477, 30
        %v675 = vpop.permute.xlu0 %674
        %vm676 = vcmp.lt.s32.totalorder %v483, 30
        %v677 = vsel %vm676, %v673, %v675
        %v678 = vsel %vm676, %v675, %v673
        %s679 = scalar_lea.vmem [#allocation7], 48
        %v680 = vld [vmem:[%s679] sm:$0xf]
        %v683 = vrot.slane %v677, 6
        %v684 = vsel %vm491, %v678, %v683
        %v686 = vmul.f32 %v680, %v684
        %v687 = vadd.f32 %v655, %v686
        %688 = vrot.lane.b32.xlu0 %v476, 29
        %v689 = vpop.permute.xlu0 %688
        %690 = vrot.lane.b32.xlu0 %v477, 29
        %v691 = vpop.permute.xlu0 %690
        %vm692 = vcmp.lt.s32.totalorder %v483, 29
        %v693 = vsel %vm692, %v689, %v691
        %v694 = vsel %vm692, %v691, %v689
        %s695 = scalar_lea.vmem [#allocation7], 52
        %v696 = vld [vmem:[%s695] sm:$0xf]
        %v699 = vrot.slane %v693, 6
        %v700 = vsel %vm491, %v694, %v699
        %v702 = vmul.f32 %v696, %v700
        %v703 = vadd.f32 %v671, %v702
        %704 = vrot.lane.b32.xlu0 %v476, 19
        %v705 = vpop.permute.xlu0 %704
        %706 = vrot.lane.b32.xlu0 %v477, 19
        %v707 = vpop.permute.xlu0 %706
        %vm708 = vcmp.lt.s32.totalorder %v483, 19
        %v709 = vsel %vm708, %v705, %v707
        %v710 = vsel %vm708, %v707, %v705
        %s711 = scalar_lea.vmem [#allocation7], 56
        %v712 = vld [vmem:[%s711] sm:$0xf]
        %v715 = vrot.slane %v709, 6
        %v716 = vsel %vm491, %v710, %v715
        %v718 = vmul.f32 %v712, %v716
        %v719 = vadd.f32 %v687, %v718
        %720 = vrot.lane.b32.xlu0 %v476, 18
        %v721 = vpop.permute.xlu0 %720
        %722 = vrot.lane.b32.xlu0 %v477, 18
        %v723 = vpop.permute.xlu0 %722
        %vm724 = vcmp.lt.s32.totalorder %v483, 18
        %v725 = vsel %vm724, %v721, %v723
        %v726 = vsel %vm724, %v723, %v721
        %s727 = scalar_lea.vmem [#allocation7], 60
        %v728 = vld [vmem:[%s727] sm:$0xf]
        %v731 = vrot.slane %v725, 6
        %v732 = vsel %vm491, %v726, %v731
        %v734 = vmul.f32 %v728, %v732
        %v735 = vadd.f32 %v703, %v734
        %736 = vrot.lane.b32.xlu0 %v476, 17
        %v737 = vpop.permute.xlu0 %736
        %738 = vrot.lane.b32.xlu0 %v477, 17
        %v739 = vpop.permute.xlu0 %738
        %vm740 = vcmp.lt.s32.totalorder %v483, 17
        %v741 = vsel %vm740, %v737, %v739
        %v742 = vsel %vm740, %v739, %v737
        %s743 = scalar_lea.vmem [#allocation7], 64
        %v744 = vld [vmem:[%s743] sm:$0xf]
        %v747 = vrot.slane %v741, 6
        %v748 = vsel %vm491, %v742, %v747
        %v750 = vmul.f32 %v744, %v748
        %v751 = vadd.f32 %v719, %v750
        %752 = vrot.lane.b32.xlu0 %v476, 16
        %v753 = vpop.permute.xlu0 %752
        %754 = vrot.lane.b32.xlu0 %v477, 16
        %v755 = vpop.permute.xlu0 %754
        %vm756 = vcmp.lt.s32.totalorder %v483, 16
        %v757 = vsel %vm756, %v753, %v755
        %v758 = vsel %vm756, %v755, %v753
        %s759 = scalar_lea.vmem [#allocation7], 68
        %v760 = vld [vmem:[%s759] sm:$0xf]
        %v763 = vrot.slane %v757, 6
        %v764 = vsel %vm491, %v758, %v763
        %v766 = vmul.f32 %v760, %v764
        %v767 = vadd.f32 %v735, %v766
        %768 = vrot.lane.b32.xlu0 %v476, 15
        %v769 = vpop.permute.xlu0 %768
        %770 = vrot.lane.b32.xlu0 %v477, 15
        %v771 = vpop.permute.xlu0 %770
        %vm772 = vcmp.lt.s32.totalorder %v483, 15
        %v773 = vsel %vm772, %v769, %v771
        %v774 = vsel %vm772, %v771, %v769
        %s775 = scalar_lea.vmem [#allocation7], 72
        %v776 = vld [vmem:[%s775] sm:$0xf]
        %v779 = vrot.slane %v773, 6
        %v780 = vsel %vm491, %v774, %v779
        %v782 = vmul.f32 %v776, %v780
        %v783 = vadd.f32 %v751, %v782
        %784 = vrot.lane.b32.xlu0 %v476, 14
        %v785 = vpop.permute.xlu0 %784
        %786 = vrot.lane.b32.xlu0 %v477, 14
        %v787 = vpop.permute.xlu0 %786
        %vm788 = vcmp.lt.s32.totalorder %v483, 14
        %v789 = vsel %vm788, %v785, %v787
        %v790 = vsel %vm788, %v787, %v785
        %s791 = scalar_lea.vmem [#allocation7], 76
        %v792 = vld [vmem:[%s791] sm:$0xf]
        %v795 = vrot.slane %v789, 6
        %v796 = vsel %vm491, %v790, %v795
        %v798 = vmul.f32 %v792, %v796
        %v799 = vadd.f32 %v767, %v798
        %800 = vrot.lane.b32.xlu0 %v476, 13
        %v801 = vpop.permute.xlu0 %800
        %802 = vrot.lane.b32.xlu0 %v477, 13
        %v803 = vpop.permute.xlu0 %802
        %vm804 = vcmp.lt.s32.totalorder %v483, 13
        %v805 = vsel %vm804, %v801, %v803
        %v806 = vsel %vm804, %v803, %v801
        %s807 = scalar_lea.vmem [#allocation7], 80
        %v808 = vld [vmem:[%s807] sm:$0xf]
        %v811 = vrot.slane %v805, 6
        %v812 = vsel %vm491, %v806, %v811
        %v814 = vmul.f32 %v808, %v812
        %v815 = vadd.f32 %v783, %v814
        %816 = vrot.lane.b32.xlu0 %v476, 3
        %v817 = vpop.permute.xlu0 %816
        %818 = vrot.lane.b32.xlu0 %v477, 3
        %v819 = vpop.permute.xlu0 %818
        %vm820 = vcmp.lt.s32.totalorder %v483, 3
        %v821 = vsel %vm820, %v817, %v819
        %v822 = vsel %vm820, %v819, %v817
        %s823 = scalar_lea.vmem [#allocation7], 84
        %v824 = vld [vmem:[%s823] sm:$0xf]
        %v827 = vrot.slane %v821, 6
        %v828 = vsel %vm491, %v822, %v827
        %v830 = vmul.f32 %v824, %v828
        %v831 = vadd.f32 %v799, %v830
        %832 = vrot.lane.b32.xlu0 %v476, 2
        %v833 = vpop.permute.xlu0 %832
        %834 = vrot.lane.b32.xlu0 %v477, 2
        %v835 = vpop.permute.xlu0 %834
        %vm836 = vcmp.lt.s32.totalorder %v483, 2
        %v837 = vsel %vm836, %v833, %v835
        %v838 = vsel %vm836, %v835, %v833
        %s839 = scalar_lea.vmem [#allocation7], 88
        %v840 = vld [vmem:[%s839] sm:$0xf]
        %v843 = vrot.slane %v837, 6
        %v844 = vsel %vm491, %v838, %v843
        %v846 = vmul.f32 %v840, %v844
        %v847 = vadd.f32 %v815, %v846
        %848 = vrot.lane.b32.xlu0 %v476, 1
        %v849 = vpop.permute.xlu0 %848
        %850 = vrot.lane.b32.xlu0 %v477, 1
        %v851 = vpop.permute.xlu0 %850
        %vm852 = vcmp.lt.s32.totalorder %v483, 1
        %v853 = vsel %vm852, %v849, %v851
        %v854 = vsel %vm852, %v851, %v849
        %s855 = scalar_lea.vmem [#allocation7], 92
        %v856 = vld [vmem:[%s855] sm:$0xf]
        %v859 = vrot.slane %v853, 6
        %v860 = vsel %vm491, %v854, %v859
        %v862 = vmul.f32 %v856, %v860
        %v863 = vadd.f32 %v831, %v862
        %s864 = scalar_lea.vmem [#allocation7], 96
        %v865 = vld [vmem:[%s864] sm:$0xf]
        %v868 = vrot.slane %v477, 6
        %v869 = vsel %vm491, %v476, %v868
        %v871 = vmul.f32 %v865, %v869
        %v872 = vadd.f32 %v847, %v871
        %873 = vrot.lane.b32.xlu0 %v476, 127
        %v874 = vpop.permute.xlu0 %873
        %875 = vrot.lane.b32.xlu0 %v477, 127
        %v876 = vpop.permute.xlu0 %875
        %vm877 = vcmp.lt.s32.totalorder %v483, 127
        %v878 = vsel %vm877, %v874, %v876
        %v879 = vsel %vm877, %v876, %v874
        %s880 = scalar_lea.vmem [#allocation7], 100
        %v881 = vld [vmem:[%s880] sm:$0xf]
        %v884 = vrot.slane %v879, 6
        %v885 = vsel %vm491, %v878, %v884
        %v887 = vmul.f32 %v881, %v885
        %v888 = vadd.f32 %v863, %v887
        %889 = vrot.lane.b32.xlu0 %v476, 126
        %v890 = vpop.permute.xlu0 %889
        %891 = vrot.lane.b32.xlu0 %v477, 126
        %v892 = vpop.permute.xlu0 %891
        %vm893 = vcmp.lt.s32.totalorder %v483, 126
        %v894 = vsel %vm893, %v890, %v892
        %v895 = vsel %vm893, %v892, %v890
        %s896 = scalar_lea.vmem [#allocation7], 104
        %v897 = vld [vmem:[%s896] sm:$0xf]
        %v900 = vrot.slane %v895, 6
        %v901 = vsel %vm491, %v894, %v900
        %v903 = vmul.f32 %v897, %v901
        %v904 = vadd.f32 %v872, %v903
        %905 = vrot.lane.b32.xlu0 %v476, 125
        %v906 = vpop.permute.xlu0 %905
        %907 = vrot.lane.b32.xlu0 %v477, 125
        %v908 = vpop.permute.xlu0 %907
        %vm909 = vcmp.lt.s32.totalorder %v483, 125
        %v910 = vsel %vm909, %v906, %v908
        %v911 = vsel %vm909, %v908, %v906
        %s912 = scalar_lea.vmem [#allocation7], 108
        %v913 = vld [vmem:[%s912] sm:$0xf]
        %v916 = vrot.slane %v911, 6
        %v917 = vsel %vm491, %v910, %v916
        %v919 = vmul.f32 %v913, %v917
        %v920 = vadd.f32 %v888, %v919
        %921 = vrot.lane.b32.xlu0 %v476, 115
        %v922 = vpop.permute.xlu0 %921
        %923 = vrot.lane.b32.xlu0 %v477, 115
        %v924 = vpop.permute.xlu0 %923
        %vm925 = vcmp.lt.s32.totalorder %v483, 115
        %v926 = vsel %vm925, %v922, %v924
        %v927 = vsel %vm925, %v924, %v922
        %s928 = scalar_lea.vmem [#allocation7], 112
        %v929 = vld [vmem:[%s928] sm:$0xf]
        %v932 = vrot.slane %v927, 6
        %v933 = vsel %vm491, %v926, %v932
        %v935 = vmul.f32 %v929, %v933
        %v936 = vadd.f32 %v904, %v935
        %937 = vrot.lane.b32.xlu0 %v476, 114
        %v938 = vpop.permute.xlu0 %937
        %939 = vrot.lane.b32.xlu0 %v477, 114
        %v940 = vpop.permute.xlu0 %939
        %vm941 = vcmp.lt.s32.totalorder %v483, 114
        %v942 = vsel %vm941, %v938, %v940
        %v943 = vsel %vm941, %v940, %v938
        %s944 = scalar_lea.vmem [#allocation7], 116
        %v945 = vld [vmem:[%s944] sm:$0xf]
        %v948 = vrot.slane %v943, 6
        %v949 = vsel %vm491, %v942, %v948
        %v951 = vmul.f32 %v945, %v949
        %v952 = vadd.f32 %v920, %v951
        %953 = vrot.lane.b32.xlu0 %v476, 113
        %v954 = vpop.permute.xlu0 %953
        %955 = vrot.lane.b32.xlu0 %v477, 113
        %v956 = vpop.permute.xlu0 %955
        %vm957 = vcmp.lt.s32.totalorder %v483, 113
        %v958 = vsel %vm957, %v954, %v956
        %v959 = vsel %vm957, %v956, %v954
        %s960 = scalar_lea.vmem [#allocation7], 120
        %v961 = vld [vmem:[%s960] sm:$0xf]
        %v964 = vrot.slane %v959, 6
        %v965 = vsel %vm491, %v958, %v964
        %v967 = vmul.f32 %v961, %v965
        %v968 = vadd.f32 %v936, %v967
        %969 = vrot.lane.b32.xlu0 %v476, 112
        %v970 = vpop.permute.xlu0 %969
        %971 = vrot.lane.b32.xlu0 %v477, 112
        %v972 = vpop.permute.xlu0 %971
        %vm973 = vcmp.lt.s32.totalorder %v483, 112
        %v974 = vsel %vm973, %v970, %v972
        %v975 = vsel %vm973, %v972, %v970
        %s976 = scalar_lea.vmem [#allocation7], 124
        %v977 = vld [vmem:[%s976] sm:$0xf]
        %v980 = vrot.slane %v975, 6
        %v981 = vsel %vm491, %v974, %v980
        %v983 = vmul.f32 %v977, %v981
        %v984 = vadd.f32 %v952, %v983
        %985 = vrot.lane.b32.xlu0 %v476, 111
        %v986 = vpop.permute.xlu0 %985
        %987 = vrot.lane.b32.xlu0 %v477, 111
        %v988 = vpop.permute.xlu0 %987
        %vm989 = vcmp.lt.s32.totalorder %v483, 111
        %v990 = vsel %vm989, %v986, %v988
        %v991 = vsel %vm989, %v988, %v986
        %s992 = scalar_lea.vmem [#allocation7], 128
        %v993 = vld [vmem:[%s992] sm:$0xf]
        %v996 = vrot.slane %v991, 6
        %v997 = vsel %vm491, %v990, %v996
        %v999 = vmul.f32 %v993, %v997
        %v1000 = vadd.f32 %v968, %v999
        %1001 = vrot.lane.b32.xlu0 %v476, 110
        %v1002 = vpop.permute.xlu0 %1001
        %1003 = vrot.lane.b32.xlu0 %v477, 110
        %v1004 = vpop.permute.xlu0 %1003
        %vm1005 = vcmp.lt.s32.totalorder %v483, 110
        %v1006 = vsel %vm1005, %v1002, %v1004
        %v1007 = vsel %vm1005, %v1004, %v1002
        %s1008 = scalar_lea.vmem [#allocation7], 132
        %v1009 = vld [vmem:[%s1008] sm:$0xf]
        %v1012 = vrot.slane %v1007, 6
        %v1013 = vsel %vm491, %v1006, %v1012
        %v1015 = vmul.f32 %v1009, %v1013
        %v1016 = vadd.f32 %v984, %v1015
        %1017 = vrot.lane.b32.xlu0 %v476, 109
        %v1018 = vpop.permute.xlu0 %1017
        %1019 = vrot.lane.b32.xlu0 %v477, 109
        %v1020 = vpop.permute.xlu0 %1019
        %vm1021 = vcmp.lt.s32.totalorder %v483, 109
        %v1022 = vsel %vm1021, %v1018, %v1020
        %v1023 = vsel %vm1021, %v1020, %v1018
        %s1024 = scalar_lea.vmem [#allocation7], 136
        %v1025 = vld [vmem:[%s1024] sm:$0xf]
        %v1028 = vrot.slane %v1023, 6
        %v1029 = vsel %vm491, %v1022, %v1028
        %v1031 = vmul.f32 %v1025, %v1029
        %v1032 = vadd.f32 %v1000, %v1031
        %1033 = vrot.lane.b32.xlu0 %v476, 99
        %v1034 = vpop.permute.xlu0 %1033
        %1035 = vrot.lane.b32.xlu0 %v477, 99
        %v1036 = vpop.permute.xlu0 %1035
        %vm1037 = vcmp.lt.s32.totalorder %v483, 99
        %v1038 = vsel %vm1037, %v1034, %v1036
        %v1039 = vsel %vm1037, %v1036, %v1034
        %s1040 = scalar_lea.vmem [#allocation7], 140
        %v1041 = vld [vmem:[%s1040] sm:$0xf]
        %v1044 = vrot.slane %v1039, 6
        %v1045 = vsel %vm491, %v1038, %v1044
        %v1047 = vmul.f32 %v1041, %v1045
        %v1048 = vadd.f32 %v1016, %v1047
        %1049 = vrot.lane.b32.xlu0 %v476, 98
        %v1050 = vpop.permute.xlu0 %1049
        %1051 = vrot.lane.b32.xlu0 %v477, 98
        %v1052 = vpop.permute.xlu0 %1051
        %vm1053 = vcmp.lt.s32.totalorder %v483, 98
        %v1054 = vsel %vm1053, %v1050, %v1052
        %v1055 = vsel %vm1053, %v1052, %v1050
        %s1056 = scalar_lea.vmem [#allocation7], 144
        %v1057 = vld [vmem:[%s1056] sm:$0xf]
        %v1060 = vrot.slane %v1055, 6
        %v1061 = vsel %vm491, %v1054, %v1060
        %v1063 = vmul.f32 %v1057, %v1061
        %v1064 = vadd.f32 %v1032, %v1063
        %1065 = vrot.lane.b32.xlu0 %v476, 97
        %v1066 = vpop.permute.xlu0 %1065
        %1067 = vrot.lane.b32.xlu0 %v477, 97
        %v1068 = vpop.permute.xlu0 %1067
        %vm1069 = vcmp.lt.s32.totalorder %v483, 97
        %v1070 = vsel %vm1069, %v1066, %v1068
        %v1071 = vsel %vm1069, %v1068, %v1066
        %s1072 = scalar_lea.vmem [#allocation7], 148
        %v1073 = vld [vmem:[%s1072] sm:$0xf]
        %v1076 = vrot.slane %v1071, 6
        %v1077 = vsel %vm491, %v1070, %v1076
        %v1079 = vmul.f32 %v1073, %v1077
        %v1080 = vadd.f32 %v1048, %v1079
        %1081 = vrot.lane.b32.xlu0 %v476, 96
        %v1082 = vpop.permute.xlu0 %1081
        %1083 = vrot.lane.b32.xlu0 %v477, 96
        %v1084 = vpop.permute.xlu0 %1083
        %vm1085 = vcmp.lt.s32.totalorder %v483, 96
        %v1086 = vsel %vm1085, %v1082, %v1084
        %v1087 = vsel %vm1085, %v1084, %v1082
        %s1088 = scalar_lea.vmem [#allocation7], 152
        %v1089 = vld [vmem:[%s1088] sm:$0xf]
        %v1092 = vrot.slane %v1087, 6
        %v1093 = vsel %vm491, %v1086, %v1092
        %v1095 = vmul.f32 %v1089, %v1093
        %v1096 = vadd.f32 %v1064, %v1095
        %1097 = vrot.lane.b32.xlu0 %v476, 95
        %v1098 = vpop.permute.xlu0 %1097
        %1099 = vrot.lane.b32.xlu0 %v477, 95
        %v1100 = vpop.permute.xlu0 %1099
        %vm1101 = vcmp.lt.s32.totalorder %v483, 95
        %v1102 = vsel %vm1101, %v1098, %v1100
        %v1103 = vsel %vm1101, %v1100, %v1098
        %s1104 = scalar_lea.vmem [#allocation7], 156
        %v1105 = vld [vmem:[%s1104] sm:$0xf]
        %v1108 = vrot.slane %v1103, 6
        %v1109 = vsel %vm491, %v1102, %v1108
        %v1111 = vmul.f32 %v1105, %v1109
        %v1112 = vadd.f32 %v1080, %v1111
        %1113 = vrot.lane.b32.xlu0 %v476, 94
        %v1114 = vpop.permute.xlu0 %1113
        %1115 = vrot.lane.b32.xlu0 %v477, 94
        %v1116 = vpop.permute.xlu0 %1115
        %vm1117 = vcmp.lt.s32.totalorder %v483, 94
        %v1118 = vsel %vm1117, %v1114, %v1116
        %v1119 = vsel %vm1117, %v1116, %v1114
        %s1120 = scalar_lea.vmem [#allocation7], 160
        %v1121 = vld [vmem:[%s1120] sm:$0xf]
        %v1124 = vrot.slane %v1119, 6
        %v1125 = vsel %vm491, %v1118, %v1124
        %v1127 = vmul.f32 %v1121, %v1125
        %v1128 = vadd.f32 %v1096, %v1127
        %1129 = vrot.lane.b32.xlu0 %v476, 93
        %v1130 = vpop.permute.xlu0 %1129
        %1131 = vrot.lane.b32.xlu0 %v477, 93
        %v1132 = vpop.permute.xlu0 %1131
        %vm1133 = vcmp.lt.s32.totalorder %v483, 93
        %v1134 = vsel %vm1133, %v1130, %v1132
        %v1135 = vsel %vm1133, %v1132, %v1130
        %s1136 = scalar_lea.vmem [#allocation7], 164
        %v1137 = vld [vmem:[%s1136] sm:$0xf]
        %v1140 = vrot.slane %v1135, 6
        %v1141 = vsel %vm491, %v1134, %v1140
        %v1143 = vmul.f32 %v1137, %v1141
        %v1144 = vadd.f32 %v1112, %v1143
        %1145 = vrot.lane.b32.xlu0 %v476, 83
        %v1146 = vpop.permute.xlu0 %1145
        %1147 = vrot.lane.b32.xlu0 %v477, 83
        %v1148 = vpop.permute.xlu0 %1147
        %vm1149 = vcmp.lt.s32.totalorder %v483, 83
        %v1150 = vsel %vm1149, %v1146, %v1148
        %v1151 = vsel %vm1149, %v1148, %v1146
        %s1152 = scalar_lea.vmem [#allocation7], 168
        %v1153 = vld [vmem:[%s1152] sm:$0xf]
        %v1156 = vrot.slane %v1151, 6
        %v1157 = vsel %vm491, %v1150, %v1156
        %v1159 = vmul.f32 %v1153, %v1157
        %v1160 = vadd.f32 %v1128, %v1159
        %1161 = vrot.lane.b32.xlu0 %v476, 82
        %v1162 = vpop.permute.xlu0 %1161
        %1163 = vrot.lane.b32.xlu0 %v477, 82
        %v1164 = vpop.permute.xlu0 %1163
        %vm1165 = vcmp.lt.s32.totalorder %v483, 82
        %v1166 = vsel %vm1165, %v1162, %v1164
        %v1167 = vsel %vm1165, %v1164, %v1162
        %s1168 = scalar_lea.vmem [#allocation7], 172
        %v1169 = vld [vmem:[%s1168] sm:$0xf]
        %v1172 = vrot.slane %v1167, 6
        %v1173 = vsel %vm491, %v1166, %v1172
        %v1175 = vmul.f32 %v1169, %v1173
        %v1176 = vadd.f32 %v1144, %v1175
        %1177 = vrot.lane.b32.xlu0 %v476, 81
        %v1178 = vpop.permute.xlu0 %1177
        %1179 = vrot.lane.b32.xlu0 %v477, 81
        %v1180 = vpop.permute.xlu0 %1179
        %vm1181 = vcmp.lt.s32.totalorder %v483, 81
        %v1182 = vsel %vm1181, %v1178, %v1180
        %v1183 = vsel %vm1181, %v1180, %v1178
        %s1184 = scalar_lea.vmem [#allocation7], 176
        %v1185 = vld [vmem:[%s1184] sm:$0xf]
        %v1188 = vrot.slane %v1183, 6
        %v1189 = vsel %vm491, %v1182, %v1188
        %v1191 = vmul.f32 %v1185, %v1189
        %v1192 = vadd.f32 %v1160, %v1191
        %1193 = vrot.lane.b32.xlu0 %v476, 80
        %v1194 = vpop.permute.xlu0 %1193
        %1195 = vrot.lane.b32.xlu0 %v477, 80
        %v1196 = vpop.permute.xlu0 %1195
        %vm1197 = vcmp.lt.s32.totalorder %v483, 80
        %v1198 = vsel %vm1197, %v1194, %v1196
        %v1199 = vsel %vm1197, %v1196, %v1194
        %s1200 = scalar_lea.vmem [#allocation7], 180
        %v1201 = vld [vmem:[%s1200] sm:$0xf]
        %v1204 = vrot.slane %v1199, 6
        %v1205 = vsel %vm491, %v1198, %v1204
        %v1207 = vmul.f32 %v1201, %v1205
        %v1208 = vadd.f32 %v1176, %v1207
        %1209 = vrot.lane.b32.xlu0 %v476, 79
        %v1210 = vpop.permute.xlu0 %1209
        %1211 = vrot.lane.b32.xlu0 %v477, 79
        %v1212 = vpop.permute.xlu0 %1211
        %vm1213 = vcmp.lt.s32.totalorder %v483, 79
        %v1214 = vsel %vm1213, %v1210, %v1212
        %v1215 = vsel %vm1213, %v1212, %v1210
        %s1216 = scalar_lea.vmem [#allocation7], 184
        %v1217 = vld [vmem:[%s1216] sm:$0xf]
        %v1220 = vrot.slane %v1215, 6
        %v1221 = vsel %vm491, %v1214, %v1220
        %v1223 = vmul.f32 %v1217, %v1221
        %v1224 = vadd.f32 %v1192, %v1223
        %1225 = vrot.lane.b32.xlu0 %v476, 78
        %v1226 = vpop.permute.xlu0 %1225
        %1227 = vrot.lane.b32.xlu0 %v477, 78
        %v1228 = vpop.permute.xlu0 %1227
        %vm1229 = vcmp.lt.s32.totalorder %v483, 78
        %v1230 = vsel %vm1229, %v1226, %v1228
        %v1231 = vsel %vm1229, %v1228, %v1226
        %s1232 = scalar_lea.vmem [#allocation7], 188
        %v1233 = vld [vmem:[%s1232] sm:$0xf]
        %v1236 = vrot.slane %v1231, 6
        %v1237 = vsel %vm491, %v1230, %v1236
        %v1239 = vmul.f32 %v1233, %v1237
        %v1240 = vadd.f32 %v1208, %v1239
        %1241 = vrot.lane.b32.xlu0 %v476, 77
        %v1242 = vpop.permute.xlu0 %1241
        %1243 = vrot.lane.b32.xlu0 %v477, 77
        %v1244 = vpop.permute.xlu0 %1243
        %vm1245 = vcmp.lt.s32.totalorder %v483, 77
        %v1246 = vsel %vm1245, %v1242, %v1244
        %v1247 = vsel %vm1245, %v1244, %v1242
        %s1248 = scalar_lea.vmem [#allocation7], 192
        %v1249 = vld [vmem:[%s1248] sm:$0xf]
        %v1252 = vrot.slane %v1247, 6
        %v1253 = vsel %vm491, %v1246, %v1252
        %v1255 = vmul.f32 %v1249, %v1253
        %v1256 = vadd.f32 %v1224, %v1255
        %v1257 = vadd.f32 %v1256, %v1240
        %1259 = vst [vmem:[#allocation1] ss:$4 sm:$0xff] %v1257
        %v1260 = vld.sshfl [vmem:[#allocation1] sm:$0xff pattern:$0x73625140]
        %v1261 = vld.sshfl [vmem:[#allocation1 + $0x8] sm:$0xff pattern:$0x73625140]
        %v1264 = vsel %vm491, %v1260, 0.0
        %v1265 = vrot.slane %v1264, 4
        %v1266 = vadd.f32 %v1264, %v1265
        %v1267 = vrot.slane %v1266, 2
        %v1268 = vadd.f32 %v1266, %v1267
        %v1269 = vrot.slane %v1268, 1
        %v1270 = vadd.f32 %v1268, %v1269
        %v1271 = vsel %vm491, %v1261, 0.0
        %v1272 = vrot.slane %v1271, 4
        %v1273 = vadd.f32 %v1271, %v1272
        %v1274 = vrot.slane %v1273, 2
        %v1275 = vadd.f32 %v1273, %v1274
        %v1276 = vrot.slane %v1275, 1
        %v1277 = vadd.f32 %v1275, %v1276
        %v1278 = vxor.u32 %v1270, 2147483648
        %v1279 = vxor.u32 %v1277, 2147483648
        %v1280 = vmul.f32 %v1278, 1.442695
        %v1281 = vpow.pop %v1280
        %v1282 = vmul.f32 %v1279, 1.442695
        %v1283 = vpow.pop %v1282
        %v1284 = vadd.f32 %v1281, 1.0
        %v1285 = vadd.f32 %v1283, 1.0
        %v1286 = vrcp.pop %v1284
        %v1287 = vmul.f32 %v1284, %v1286
        %v1288 = vsub.f32 1.0, %v1287
        %v1289 = vmul.f32 %v1286, %v1288
        %v1290 = vadd.f32 %v1286, %v1289
        %vm1291 = vweird.f32 %v1284
        %vm1292 = vweird.f32 %v1286
        %vm1293 = vmor %vm1291, %vm1292
        %v1294 = vsel %vm1293, %v1286, %v1290
        %v1295 = vand.u32 2147483647, %v1284
        %vm1296 = vcmp.eq.f32.partialorder %v1295, 8.507059e+37
        %v1297 = vand.u32 %v1284, 2147483648
        %v1298 = vor.u32 1.1754944e-38, %v1297
        %v1299 = vsel %vm1296, %v1298, %v1294
        %v1300 = vmul.f32 1.0, %v1299
        %v1301 = vrcp.pop %v1285
        %v1302 = vmul.f32 %v1285, %v1301
        %v1303 = vsub.f32 1.0, %v1302
        %v1304 = vmul.f32 %v1301, %v1303
        %v1305 = vadd.f32 %v1301, %v1304
        %vm1306 = vweird.f32 %v1285
        %vm1307 = vweird.f32 %v1301
        %vm1308 = vmor %vm1306, %vm1307
        %v1309 = vsel %vm1308, %v1301, %v1305
        %v1310 = vand.u32 2147483647, %v1285
        %vm1311 = vcmp.eq.f32.partialorder %v1310, 8.507059e+37
        %v1312 = vand.u32 %v1285, 2147483648
        %v1313 = vor.u32 1.1754944e-38, %v1312
        %v1314 = vsel %vm1311, %v1313, %v1309
        %v1315 = vmul.f32 1.0, %v1314
        %v1318 = vrot.slane %v1315, 4
        %v1319 = vsel %vm257, %v1300, %v1318
        %v1321 = vmul.f32 %v431, %v1319
        %1322 = vst [vmem:[%s232] sm:$0xff] %v1321
        %s1323 = sand.u32 %s119, 1
        %s1324 = scalar_lea.sflag [#allocation6], %s1323
        %s1325 = sand.u32 %s119, 1
        %s1326 = smul.addr %s1325, 8
        %s1327 = scalar_lea.vmem [#allocation9], %s1326
        // Predicated region
        $region45: #{tpu_custom_call.1} parent=35 // pred_check
          %p1328 = pneg %p129
        $region46: #{tpu_custom_call.1} parent=35 // pred_check_branch
          %1330 = sbr.rel (%p1328) target = $region48
        $region47: #{tpu_custom_call.1} parent=35 // pred_region
          %1332 = vsyncadd %s1324, 0
          %s1333 = smul.addr %s22, 2
          %s1334 = smul.addr %s1333, 4
          %s1335 = scalar_lea.hbm %s4, %s1334
          %s1337 = sshll.u32 %s1327, 4
          %s1338 = int_to_ptr.vmem [resolvable:$true] %s1337
          %s1339 = sshll.u32 %s1335, 4
          %s1340 = int_to_ptr.hbm [resolvable:$true] %s1339
          %1342 = dma.vmem_to_hbm [thread:$0]  %s1338, 128, %s1340, %s1324
        $region48: #{tpu_custom_call.1} parent=35 // pred_fallthru
          _
      $region36: #{tpu_custom_call.1} parent=5 // pred_fallthru
        _
      %p1343 = scmp.le.s32.totalorder 2, %s17
      // Predicated region
      $region49: #{tpu_custom_call.1} parent=5 // pred_check
        %p1344 = pneg %p1343
      $region50: #{tpu_custom_call.1} parent=5 // pred_check_branch
        %1346 = sbr.rel (%p1344) target = $region52
      $region51: #{tpu_custom_call.1} parent=5 // pred_region
        %s1347 = ssub.s32 %s17, 2
        // Predicated region
        $region53: #{tpu_custom_call.1} parent=51 // pred_check
          %p1348 = pneg %p135
        $region54: #{tpu_custom_call.1} parent=51 // pred_check_branch
          %1350 = sbr.rel (%p1348) target = $region56
        $region55: #{tpu_custom_call.1} parent=51 // pred_region
          %s1351 = sand.u32 %s120, 1
          %s1352 = scalar_lea.sflag [#allocation6], %s1351
          %s1353 = sand.u32 %s120, 1
          %s1354 = smul.addr %s1353, 8
          %s1355 = scalar_lea.vmem [#allocation9], %s1354
          %1357 = dma.done %s1352, 128
        $region56: #{tpu_custom_call.1} parent=51 // pred_fallthru
          _
      $region52: #{tpu_custom_call.1} parent=5 // pred_fallthru
        _
    $region6: #{tpu_custom_call.1} parent=1 // loop_footer
      %s21 = sadd.s32 1, %s17
    $region7: #{tpu_custom_call.1} parent=1 // loop_footer_branch
      %16 = sbr.rel target = $region3
    $region8: #{tpu_custom_call.1} parent=1 // loop_exit
      _
    %1358 = vsyncpa [#allocation5], 1
    %s1359 = scalar_lea.sflag [#allocation5], 1
    %1360 = vsyncpa %s1359, 1
    %1361 = vsyncpa [#allocation8], 1
    %1362 = vsyncpa [#allocation6], 1
    %s1363 = scalar_lea.sflag [#allocation6], 1
    %1364 = vsyncpa %s1363, 1

</llo_original>
